<compile_context>
chip_gen: v6e
topology: v6e:2x2x1
jax: 0.10.0
libtpu: 0.0.40
codegen_flags: <defaults>
</compile_context>

<pallas_src>
import functools

import jax
import jax.numpy as jnp
from jax.experimental import pallas as pl
from jax.experimental.pallas import tpu as pltpu


def _round_up(x, m):
    return ((x + m - 1) // m) * m


def _supcon_tile_kernel(*refs, use_labels, k_resident, temperature,
                        base_temperature, n_rows, n_cols, tile_q, tile_k):
    if use_labels:
        row_lab_ref, col_lab_ref, q_ref, k_ref, o_ref = refs[:5]
        m_sc, z_sc, s1_sc, p_sc = refs[5:]
    else:
        mask_ref, q_ref, k_ref, o_ref = refs[:4]
        m_sc, z_sc, s1_sc, p_sc = refs[4:]

    qi = pl.program_id(0)
    ki = pl.program_id(1)

    @pl.when(ki == 0)
    def _init():
        m_sc[...] = jnp.full_like(m_sc, -jnp.inf)
        z_sc[...] = jnp.zeros_like(z_sc)
        s1_sc[...] = jnp.zeros_like(s1_sc)
        p_sc[...] = jnp.zeros_like(p_sc)

    # Contrast tile: sliced out of the VMEM-resident slab, or the streamed
    # per-step block.
    if k_resident:
        k_start = pl.multiple_of(ki * tile_k, tile_k)
        k_tile = k_ref[pl.ds(k_start, tile_k), :]
    else:
        k_tile = k_ref[...]

    # 1/temperature is pre-folded into the Q slab by the wrapper, so the hot
    # loop is a single bf16 x bf16 matmul with f32 accumulation, contracting
    # on the shared feature axis (no K transpose / relayout).
    logits = jax.lax.dot_general(
        q_ref[...], k_tile,
        dimension_numbers=(((1,), (1,)), ((), ())),
        preferred_element_type=jnp.float32)                  # [TQ, TK] f32

    row_ids = qi * tile_q + jax.lax.broadcasted_iota(jnp.int32, (tile_q, 1), 0)
    col_ids = ki * tile_k + jax.lax.broadcasted_iota(jnp.int32, (1, tile_k), 1)
    # Valid contrast columns: not the self column, not a padded column.
    cmask = jnp.logical_and(row_ids != col_ids, col_ids < n_cols)

    if use_labels:
        pos = jnp.where(
            jnp.logical_and(row_lab_ref[...] == col_lab_ref[...], cmask),
            jnp.float32(1.0), jnp.float32(0.0))
    else:
        pos = jnp.where(cmask, mask_ref[...].astype(jnp.float32),
                        jnp.float32(0.0))

    # Online (flash-style) softmax statistics; only [TQ,1] scalars survive
    # across contrast tiles.  The running max is taken over the *raw* logits
    # (self + zero padded columns included) -> always finite; the loss only
    # uses m + log(Z) which is shift-invariant, so this is exact.
    m_prev = m_sc[...]
    m_new = jnp.maximum(m_prev, jnp.max(logits, axis=1, keepdims=True))
    alpha = jnp.exp(m_prev - m_new)
    masked_logits = jnp.where(cmask, logits, -jnp.inf)       # exp(-inf)==0
    z_sc[...] = alpha * z_sc[...] + jnp.sum(jnp.exp(masked_logits - m_new),
                                            axis=1, keepdims=True)
    s1_sc[...] = s1_sc[...] + jnp.sum(pos * logits, axis=1, keepdims=True)
    p_sc[...] = p_sc[...] + jnp.sum(pos, axis=1, keepdims=True)
    m_sc[...] = m_new

    @pl.when(ki == pl.num_programs(1) - 1)
    def _finalize():
        m, z, s1, p = m_sc[...], z_sc[...], s1_sc[...], p_sc[...]
        # sum(pos * log_prob) = S1 - P * (m + log Z);  rows with no positives
        # get 0 (matches the torch NaN -> 0 fixup).
        has_pos = p > 0.0
        mlpp = jnp.where(
            has_pos,
            (s1 - p * (m + jnp.log(z))) / jnp.where(has_pos, p, 1.0),
            0.0)
        loss_rows = (-(temperature / base_temperature)) * mlpp       # [TQ,1]
        # Zero padded anchor rows explicitly so the partial sum is exact even
        # if a user label collides with the padding sentinel.
        loss_rows = jnp.where(row_ids < n_rows, loss_rows, 0.0)
        tile_sum = jnp.sum(loss_rows)
        # Tiny lane-dense partial-sum slab per row tile.
        o_ref[...] = jnp.full((1, 8, 128), tile_sum, jnp.float32)


def contrastive_loss(features, labels=None, mask=None, preds=None,
                     temperature=0.5, contrast_mode='all',
                     base_temperature=0.5, _force_stream_k=False):
    """JAX/Pallas port of ContrastiveLoss.forward.

    Note: F.normalize(..., dim=1) is applied along axis 1 (the views axis for
    [B, V, D] input), faithful to the torch code as written.
    The `preds` branch of the torch code computes `mask * mask_incorrect` and
    discards the result, so it is a forward no-op and is omitted here.
    """
    features = jnp.asarray(features, jnp.float32)

    # F.normalize(features, p=2, dim=1)
    norm = jnp.sqrt(jnp.sum(features * features, axis=1, keepdims=True))
    features = features / jnp.maximum(norm, 1e-12)

    if features.ndim == 2:
        features = features.reshape(features.shape[0], 1, -1)
    if features.ndim > 3:
        features = features.reshape(features.shape[0], features.shape[1], -1)

    batch_size, contrast_count, dim = features.shape

    # torch.cat(torch.unbind(features, dim=1), dim=0) -> view-major stacking
    contrast_feature = jnp.transpose(features, (1, 0, 2)).reshape(
        contrast_count * batch_size, dim)

    if contrast_mode == 'one':
        anchor_count = 1
    elif contrast_mode == 'all':
        anchor_count = contrast_count
    else:
        raise ValueError('Unknown mode: {}'.format(contrast_mode))

    n_rows = anchor_count * batch_size          # anchor rows
    n_cols = contrast_count * batch_size        # contrast columns
    anchor_feature = contrast_feature[:n_rows]  # first view(s), view-major

    # ------------------------- tiling decisions ---------------------------
    kind = jax.devices()[0].device_kind.lower()
    is_v7 = ('v7' in kind) or ('7x' in kind)
    rows_128 = _round_up(n_rows, 128)
    cols_128 = _round_up(n_cols, 128)
    tq = min(512, rows_128)
    tk = min(512, cols_128)
    if is_v7 and rows_128 >= 256:
        # Keep grid[0] >= 2 so the "parallel" row axis shards across both TCs.
        tq = min(tq, max(128, ((rows_128 // 2) // 128) * 128))
    n_rows_pad = _round_up(n_rows, tq)
    n_cols_pad = _round_up(n_cols, tk)
    d_pad = _round_up(dim, 128)                 # 128-lane contraction depth

    # Keep the whole contrast slab VMEM-resident when it is small enough: it
    # is then DMA'd from HBM once total instead of once per row tile.
    k_slab_bytes = n_cols_pad * d_pad * 2
    k_resident = (not _force_stream_k) and (
        k_slab_bytes <= ((3 << 20) if is_v7 else (8 << 20)))

    use_labels = labels is not None

    # bf16 feature slabs, zero-padded; 1/temperature folded into Q here
    # (fuses into the pad+cast, removing a per-step rescale pass in-kernel).
    inv_temp = jnp.float32(1.0 / temperature)
    q_feat = jnp.zeros((n_rows_pad, d_pad), jnp.bfloat16).at[
        :n_rows, :dim].set((anchor_feature * inv_temp).astype(jnp.bfloat16))
    k_feat = jnp.zeros((n_cols_pad, d_pad), jnp.bfloat16).at[
        :n_cols, :dim].set(contrast_feature.astype(jnp.bfloat16))

    grid = (n_rows_pad // tq, n_cols_pad // tk)
    n_k_steps = grid[1]

    q_spec = pl.BlockSpec((tq, d_pad), lambda qi, ki: (qi, 0))
    if k_resident:
        # Constant index map + full-array block: DMA'd once, stays in VMEM.
        k_spec = pl.BlockSpec((n_cols_pad, d_pad), lambda qi, ki: (0, 0))
    else:
        extra_k = ({'pipeline_mode': pl.Buffered(3)}
                   if n_k_steps >= 3 else {})
        k_spec = pl.BlockSpec((tk, d_pad), lambda qi, ki: (ki, 0), **extra_k)

    out_shape = jax.ShapeDtypeStruct((grid[0], 8, 128), jnp.float32)
    out_spec = pl.BlockSpec((1, 8, 128), lambda qi, ki: (qi, 0, 0))
    scratch = [pltpu.VMEM((tq, 1), jnp.float32) for _ in range(4)]

    # VMEM budget: raise the scoped limit when big tiles / resident K need it.
    est = 2 * tq * d_pad * 2                                   # Q (2 bufs)
    est += (2 * n_cols_pad * d_pad * 2) if k_resident else (3 * tk * d_pad * 2)
    est += 6 * tq * tk * 4                                     # f32 temporaries
    if not use_labels:
        est += 3 * tq * tk                                     # int8 mask tiles
    est += 4 * tq * 4 + 4 * tk * 4 + (64 << 10)
    vmem_cap = (48 << 20) if is_v7 else (100 << 20)            # v7x: 64 MiB part
    vmem_limit = int(min(max(32 << 20, int(est * 1.25)), vmem_cap))

    cparams = pltpu.CompilerParams(
        dimension_semantics=("parallel", "arbitrary"),
        vmem_limit_bytes=vmem_limit)

    kernel = functools.partial(
        _supcon_tile_kernel, use_labels=use_labels, k_resident=k_resident,
        temperature=float(temperature),
        base_temperature=float(base_temperature),
        n_rows=n_rows, n_cols=n_cols, tile_q=tq, tile_k=tk)

    if use_labels:
        labels = jnp.asarray(labels).reshape(-1)
        if labels.shape[0] != batch_size:
            raise ValueError('Num of labels does not match num of features')
        lab_cols = jnp.tile(labels.astype(jnp.int32), contrast_count)
        lab_rows = lab_cols[:n_rows]
        row_lab = jnp.full((n_rows_pad, 1), -1, jnp.int32).at[
            :n_rows, 0].set(lab_rows)
        col_lab = jnp.full((1, n_cols_pad), -2, jnp.int32).at[
            0, :n_cols].set(lab_cols)

        out = pl.pallas_call(
            kernel,
            out_shape=out_shape,
            grid=grid,
            in_specs=[
                pl.BlockSpec((tq, 1), lambda qi, ki: (qi, 0)),   # row labels
                pl.BlockSpec((1, tk), lambda qi, ki: (0, ki)),   # col labels
                q_spec, k_spec],
            out_specs=out_spec,
            scratch_shapes=scratch,
            compiler_params=cparams,
        )(row_lab, col_lab, q_feat, k_feat)
    else:
        if mask is None:
            raise ValueError('Either labels or mask must be provided')
        mask = jnp.asarray(mask, jnp.float32)
        mask_rep = jnp.tile(mask, (anchor_count, contrast_count))
        # int8 mask tiles: half the bf16 DMA, exact for 0/1 (and integer)
        # masks.  TODO(synk): fractional mask weights are truncated here.
        mask_pad = jnp.zeros((n_rows_pad, n_cols_pad), jnp.int8).at[
            :n_rows, :n_cols].set(mask_rep.astype(jnp.int8))
        extra_m = ({'pipeline_mode': pl.Buffered(3)}
                   if n_k_steps >= 3 else {})
        mask_spec = pl.BlockSpec((tq, tk), lambda qi, ki: (qi, ki), **extra_m)

        out = pl.pallas_call(
            kernel,
            out_shape=out_shape,
            grid=grid,
            in_specs=[mask_spec, q_spec, k_spec],
            out_specs=out_spec,
            scratch_shapes=scratch,
            compiler_params=cparams,
        )(mask_pad, q_feat, k_feat)

    # loss.view(anchor_count, batch_size).mean(): padded rows contribute 0 to
    # the per-tile partial sums, so sum(partials) / n_rows is exact.
    return jnp.sum(out[:, 0, 0]) / n_rows


def _reference_loss(features, labels=None, mask=None, temperature=0.5,
                    contrast_mode='all', base_temperature=0.5,
                    matmul_dtype=jnp.float32):
    """Pure-JAX reference mirroring the torch forward (dense formulation)."""
    features = jnp.asarray(features, jnp.float32)
    norm = jnp.sqrt(jnp.sum(features * features, axis=1, keepdims=True))
    features = features / jnp.maximum(norm, 1e-12)
    if features.ndim == 2:
        features = features.reshape(features.shape[0], 1, -1)
    if features.ndim > 3:
        features = features.reshape(features.shape[0], features.shape[1], -1)
    bsz, nviews, dim = features.shape
    if labels is not None:
        labels = jnp.asarray(labels).reshape(-1, 1)
        mask = (labels == labels.T).astype(jnp.float32)
    else:
        mask = jnp.asarray(mask, jnp.float32)
    cf = jnp.transpose(features, (1, 0, 2)).reshape(nviews * bsz, dim)
    if contrast_mode == 'one':
        af, anchor_count = cf[:bsz], 1
    else:
        af, anchor_count = cf, nviews
    if matmul_dtype == jnp.bfloat16:
        a_mm = (af * jnp.float32(1.0 / temperature)).astype(jnp.bfloat16)
        adc = jax.lax.dot_general(a_mm, cf.astype(jnp.bfloat16),
                                  (((1,), (1,)), ((), ())),
                                  preferred_element_type=jnp.float32)
    else:
        adc = (af @ cf.T) / temperature
    n_rows, n_cols = adc.shape
    logits = adc - jnp.max(adc, axis=1, keepdims=True)
    mask = jnp.tile(mask, (anchor_count, nviews))
    logits_mask = 1.0 - (jnp.arange(n_rows)[:, None]
                         == jnp.arange(n_cols)[None, :]).astype(jnp.float32)
    mask = mask * logits_mask
    exp_logits = jnp.exp(logits) * logits_mask
    log_prob = logits - jnp.log(exp_logits.sum(1, keepdims=True))
    den = mask.sum(1)
    mlpp = jnp.where(den > 0, (mask * log_prob).sum(1)
                     / jnp.where(den > 0, den, 1.0), 0.0)
    loss = -(temperature / base_temperature) * mlpp
    return loss.reshape(anchor_count, bsz).mean()


if __name__ == "__main__":
    key = jax.random.PRNGKey(0)
    kf, kl = jax.random.split(key)

    B, V, D = 8, 2, 32
    features = jax.random.normal(kf, (B, V, D), dtype=jnp.float32)
    labels = jax.random.randint(kl, (B,), 0, 4, dtype=jnp.int32)

    # Labels path (positive mask built in-kernel, contrast slab VMEM-resident).
    loss = jax.block_until_ready(contrastive_loss(features, labels=labels))

    # Explicit-mask path (int8 mask tiles) must agree with the labels path.
    explicit_mask = (labels[:, None] == labels[None, :]).astype(jnp.float32)
    loss_mask_path = jax.block_until_ready(
        contrastive_loss(features, mask=explicit_mask))

    # Streamed-K path (forced) must agree with the resident-K path.
    loss_stream = jax.block_until_ready(
        contrastive_loss(features, labels=labels, _force_stream_k=True))

    # contrast_mode='one' path.
    loss_one = jax.block_until_ready(
        contrastive_loss(features, labels=labels, contrast_mode='one'))

    # References: bf16-matmul-matched (tight) and full-f32 torch mirror (loose,
    # bf16 MXU operands introduce small numeric differences).
    ref_bf16 = jax.block_until_ready(
        _reference_loss(features, labels=labels, matmul_dtype=jnp.bfloat16))
    ref_f32 = jax.block_until_ready(_reference_loss(features, labels=labels))
    ref_one = jax.block_until_ready(
        _reference_loss(features, labels=labels, contrast_mode='one',
                        matmul_dtype=jnp.bfloat16))

    assert jnp.allclose(loss, loss_mask_path, rtol=1e-5, atol=1e-5), \
        (loss, loss_mask_path)
    assert jnp.allclose(loss, loss_stream, rtol=1e-5, atol=1e-5), \
        (loss, loss_stream)
    assert jnp.allclose(loss, ref_bf16, rtol=2e-3, atol=2e-3), (loss, ref_bf16)
    assert jnp.allclose(loss, ref_f32, rtol=1e-1, atol=1e-1), (loss, ref_f32)
    assert jnp.allclose(loss_one, ref_one, rtol=2e-3, atol=2e-3), \
        (loss_one, ref_one)

    print("KERNEL_OK")
</pallas_src>

<mosaic_0001>
module attributes {stable_mosaic.version = 11 : i64} {
  func.func @_supcon_tile_kernel(%arg0: i32, %arg1: i32, %arg2: memref<128x1xi32, #tpu.memory_space<vmem>>, %arg3: memref<1x128xi32, #tpu.memory_space<vmem>>, %arg4: memref<128x128xbf16, #tpu.memory_space<vmem>>, %arg5: memref<128x128xbf16, #tpu.memory_space<vmem>>, %arg6: memref<1x8x128xf32, #tpu.memory_space<vmem>>, %arg7: memref<128x1xf32, #tpu.memory_space<vmem>>, %arg8: memref<128x1xf32, #tpu.memory_space<vmem>>, %arg9: memref<128x1xf32, #tpu.memory_space<vmem>>, %arg10: memref<128x1xf32, #tpu.memory_space<vmem>>) attributes {dimension_semantics = [#tpu.dimension_semantics<parallel>, #tpu.dimension_semantics<arbitrary>], iteration_bounds = array<i64: 1, 1>, scalar_prefetch = 0 : i64, scratch_operands = 4 : i64, tpu.core_type = #tpu.core_type<tc>, window_params = [{transform_indices = @transform_0, window_bounds = array<i64: 128, 1>}, {transform_indices = @transform_1, window_bounds = array<i64: 1, 128>}, {transform_indices = @transform_2, window_bounds = array<i64: 128, 128>}, {pipeline_mode = #tpu.pipeline_mode<synchronous>, transform_indices = @transform_3, window_bounds = array<i64: 128, 128>}, {transform_indices = @transform_4, window_bounds = array<i64: 1, 8, 128>}]} {
    %c0_i32 = arith.constant 0 : i32
    %0 = arith.cmpi eq, %arg1, %c0_i32 : i32
    %1 = arith.extui %0 : i1 to i32
    %c0_i32_0 = arith.constant 0 : i32
    %2 = arith.cmpi ne, %1, %c0_i32_0 : i32
    scf.if %2 {
      %cst_34 = arith.constant 0xFF800000 : f32
      %65 = vector.broadcast %cst_34 : f32 to vector<128x1xf32>
      %c0_35 = arith.constant 0 : index
      %c0_36 = arith.constant 0 : index
      %66 = vector.load %arg7[%c0_35, %c0_36] : memref<128x1xf32, #tpu.memory_space<vmem>>, vector<128x1xf32>
      tpu.vector_store %arg7[%c0_35, %c0_36], %65 {strides = array<i32>} : memref<128x1xf32, #tpu.memory_space<vmem>>, vector<128x1xf32>,
      %cst_37 = arith.constant 0.000000e+00 : f32
      %67 = vector.broadcast %cst_37 : f32 to vector<128x1xf32>
      %c0_38 = arith.constant 0 : index
      %c0_39 = arith.constant 0 : index
      %68 = vector.load %arg8[%c0_38, %c0_39] : memref<128x1xf32, #tpu.memory_space<vmem>>, vector<128x1xf32>
      tpu.vector_store %arg8[%c0_38, %c0_39], %67 {strides = array<i32>} : memref<128x1xf32, #tpu.memory_space<vmem>>, vector<128x1xf32>,
      %cst_40 = arith.constant 0.000000e+00 : f32
      %69 = vector.broadcast %cst_40 : f32 to vector<128x1xf32>
      %c0_41 = arith.constant 0 : index
      %c0_42 = arith.constant 0 : index
      %70 = vector.load %arg9[%c0_41, %c0_42] : memref<128x1xf32, #tpu.memory_space<vmem>>, vector<128x1xf32>
      tpu.vector_store %arg9[%c0_41, %c0_42], %69 {strides = array<i32>} : memref<128x1xf32, #tpu.memory_space<vmem>>, vector<128x1xf32>,
      %cst_43 = arith.constant 0.000000e+00 : f32
      %71 = vector.broadcast %cst_43 : f32 to vector<128x1xf32>
      %c0_44 = arith.constant 0 : index
      %c0_45 = arith.constant 0 : index
      %72 = vector.load %arg10[%c0_44, %c0_45] : memref<128x1xf32, #tpu.memory_space<vmem>>, vector<128x1xf32>
      tpu.vector_store %arg10[%c0_44, %c0_45], %71 {strides = array<i32>} : memref<128x1xf32, #tpu.memory_space<vmem>>, vector<128x1xf32>,
    } else {
    }
    %c128_i32 = arith.constant 128 : i32
    %3 = arith.muli %arg1, %c128_i32 : i32
    %4 = tpu.assume_multiple %3, 128 : i32
    %5 = arith.index_cast %4 : i32 to index
    %c0 = arith.constant 0 : index
    %6 = vector.load %arg5[%5, %c0] : memref<128x128xbf16, #tpu.memory_space<vmem>>, vector<128x128xbf16>
    %c0_1 = arith.constant 0 : index
    %c0_2 = arith.constant 0 : index
    %7 = vector.load %arg4[%c0_1, %c0_2] : memref<128x128xbf16, #tpu.memory_space<vmem>>, vector<128x128xbf16>
    %cst = arith.constant dense<0.000000e+00> : vector<128x128xf32>
    %8 = tpu.matmul %7, %6, %cst {dimension_numbers = #tpu.dot_dimension_numbers<[1], [1], [0], [0], [0, 0, 1, 0], [], []>} : vector<128x128xbf16>, vector<128x128xbf16>, vector<128x128xf32> -> vector<128x128xf32>
    %c128_i32_3 = arith.constant 128 : i32
    %9 = arith.muli %arg0, %c128_i32_3 : i32
    %10 = tpu.iota {dimensions = array<i32: 0>} : vector<128x1xi32>
    %11 = vector.broadcast %9 : i32 to vector<128x1xi32>
    %12 = arith.addi %11, %10 : vector<128x1xi32>
    %c128_i32_4 = arith.constant 128 : i32
    %13 = arith.muli %arg1, %c128_i32_4 : i32
    %14 = tpu.iota {dimensions = array<i32: 1>} : vector<1x128xi32>
    %15 = vector.broadcast %13 : i32 to vector<1x128xi32>
    %16 = arith.addi %15, %14 : vector<1x128xi32>
    %17 = vector.broadcast %12 : vector<128x1xi32> to vector<128x128xi32>
    %18 = vector.broadcast %16 : vector<1x128xi32> to vector<128x128xi32>
    %19 = arith.cmpi ne, %17, %18 : vector<128x128xi32>
    %c16_i32 = arith.constant 16 : i32
    %20 = vector.broadcast %c16_i32 : i32 to vector<1x128xi32>
    %21 = arith.cmpi slt, %16, %20 : vector<1x128xi32>
    %22 = vector.broadcast %21 : vector<1x128xi1> to vector<128x128xi1>
    %23 = arith.andi %19, %22 : vector<128x128xi1>
    %c0_5 = arith.constant 0 : index
    %c0_6 = arith.constant 0 : index
    %24 = vector.load %arg2[%c0_5, %c0_6] : memref<128x1xi32, #tpu.memory_space<vmem>>, vector<128x1xi32>
    %c0_7 = arith.constant 0 : index
    %c0_8 = arith.constant 0 : index
    %25 = vector.load %arg3[%c0_7, %c0_8] : memref<1x128xi32, #tpu.memory_space<vmem>>, vector<1x128xi32>
    %26 = vector.broadcast %24 : vector<128x1xi32> to vector<128x128xi32>
    %27 = vector.broadcast %25 : vector<1x128xi32> to vector<128x128xi32>
    %28 = arith.cmpi eq, %26, %27 : vector<128x128xi32>
    %29 = arith.andi %28, %23 : vector<128x128xi1>
    %cst_9 = arith.constant 1.000000e+00 : f32
    %cst_10 = arith.constant 0.000000e+00 : f32
    %30 = vector.broadcast %cst_9 : f32 to vector<128x128xf32>
    %31 = vector.broadcast %cst_10 : f32 to vector<128x128xf32>
    %32 = arith.select %29, %30, %31 : vector<128x128xi1>, vector<128x128xf32>
    %c0_11 = arith.constant 0 : index
    %c0_12 = arith.constant 0 : index
    %33 = vector.load %arg7[%c0_11, %c0_12] : memref<128x1xf32, #tpu.memory_space<vmem>>, vector<128x1xf32>
    %cst_13 = arith.constant dense<0xFF800000> : vector<128xf32>
    %34 = vector.multi_reduction <maximumf>, %8, %cst_13 [1] : vector<128x128xf32> to vector<128xf32>
    %35 = vector.shape_cast %34 : vector<128xf32> to vector<128x1xf32>
    %36 = arith.maximumf %33, %35 : vector<128x1xf32>
    %37 = arith.subf %33, %36 : vector<128x1xf32>
    %38 = math.exp %37 : vector<128x1xf32>
    %cst_14 = arith.constant 0xFF800000 : f32
    %39 = vector.broadcast %cst_14 : f32 to vector<128x128xf32>
    %40 = arith.select %23, %8, %39 : vector<128x128xi1>, vector<128x128xf32>
    %c0_15 = arith.constant 0 : index
    %c0_16 = arith.constant 0 : index
    %41 = vector.load %arg8[%c0_15, %c0_16] : memref<128x1xf32, #tpu.memory_space<vmem>>, vector<128x1xf32>
    %42 = arith.mulf %38, %41 : vector<128x1xf32>
    %43 = vector.broadcast %36 : vector<128x1xf32> to vector<128x128xf32>
    %44 = arith.subf %40, %43 : vector<128x128xf32>
    %45 = math.exp %44 : vector<128x128xf32>
    %cst_17 = arith.constant dense<0.000000e+00> : vector<128xf32>
    %46 = vector.multi_reduction <add>, %45, %cst_17 [1] : vector<128x128xf32> to vector<128xf32>
    %47 = vector.shape_cast %46 : vector<128xf32> to vector<128x1xf32>
    %48 = arith.addf %42, %47 : vector<128x1xf32>
    %c0_18 = arith.constant 0 : index
    %c0_19 = arith.constant 0 : index
    %49 = vector.load %arg8[%c0_18, %c0_19] : memref<128x1xf32, #tpu.memory_space<vmem>>, vector<128x1xf32>
    tpu.vector_store %arg8[%c0_18, %c0_19], %48 {strides = array<i32>} : memref<128x1xf32, #tpu.memory_space<vmem>>, vector<128x1xf32>,
    %c0_20 = arith.constant 0 : index
    %c0_21 = arith.constant 0 : index
    %50 = vector.load %arg9[%c0_20, %c0_21] : memref<128x1xf32, #tpu.memory_space<vmem>>, vector<128x1xf32>
    %51 = arith.mulf %32, %8 : vector<128x128xf32>
    %cst_22 = arith.constant dense<0.000000e+00> : vector<128xf32>
    %52 = vector.multi_reduction <add>, %51, %cst_22 [1] : vector<128x128xf32> to vector<128xf32>
    %53 = vector.shape_cast %52 : vector<128xf32> to vector<128x1xf32>
    %54 = arith.addf %50, %53 : vector<128x1xf32>
    %c0_23 = arith.constant 0 : index
    %c0_24 = arith.constant 0 : index
    %55 = vector.load %arg9[%c0_23, %c0_24] : memref<128x1xf32, #tpu.memory_space<vmem>>, vector<128x1xf32>
    tpu.vector_store %arg9[%c0_23, %c0_24], %54 {strides = array<i32>} : memref<128x1xf32, #tpu.memory_space<vmem>>, vector<128x1xf32>,
    %c0_25 = arith.constant 0 : index
    %c0_26 = arith.constant 0 : index
    %56 = vector.load %arg10[%c0_25, %c0_26] : memref<128x1xf32, #tpu.memory_space<vmem>>, vector<128x1xf32>
    %cst_27 = arith.constant dense<0.000000e+00> : vector<128xf32>
    %57 = vector.multi_reduction <add>, %32, %cst_27 [1] : vector<128x128xf32> to vector<128xf32>
    %58 = vector.shape_cast %57 : vector<128xf32> to vector<128x1xf32>
    %59 = arith.addf %56, %58 : vector<128x1xf32>
    %c0_28 = arith.constant 0 : index
    %c0_29 = arith.constant 0 : index
    %60 = vector.load %arg10[%c0_28, %c0_29] : memref<128x1xf32, #tpu.memory_space<vmem>>, vector<128x1xf32>
    tpu.vector_store %arg10[%c0_28, %c0_29], %59 {strides = array<i32>} : memref<128x1xf32, #tpu.memory_space<vmem>>, vector<128x1xf32>,
    %c0_30 = arith.constant 0 : index
    %c0_31 = arith.constant 0 : index
    %61 = vector.load %arg7[%c0_30, %c0_31] : memref<128x1xf32, #tpu.memory_space<vmem>>, vector<128x1xf32>
    tpu.vector_store %arg7[%c0_30, %c0_31], %36 {strides = array<i32>} : memref<128x1xf32, #tpu.memory_space<vmem>>, vector<128x1xf32>,
    %c0_i32_32 = arith.constant 0 : i32
    %62 = arith.cmpi eq, %arg1, %c0_i32_32 : i32
    %63 = arith.extui %62 : i1 to i32
    %c0_i32_33 = arith.constant 0 : i32
    %64 = arith.cmpi ne, %63, %c0_i32_33 : i32
    scf.if %64 {
      %c0_34 = arith.constant 0 : index
      %c0_35 = arith.constant 0 : index
      %65 = vector.load %arg7[%c0_34, %c0_35] : memref<128x1xf32, #tpu.memory_space<vmem>>, vector<128x1xf32>
      %c0_36 = arith.constant 0 : index
      %c0_37 = arith.constant 0 : index
      %66 = vector.load %arg8[%c0_36, %c0_37] : memref<128x1xf32, #tpu.memory_space<vmem>>, vector<128x1xf32>
      %c0_38 = arith.constant 0 : index
      %c0_39 = arith.constant 0 : index
      %67 = vector.load %arg9[%c0_38, %c0_39] : memref<128x1xf32, #tpu.memory_space<vmem>>, vector<128x1xf32>
      %c0_40 = arith.constant 0 : index
      %c0_41 = arith.constant 0 : index
      %68 = vector.load %arg10[%c0_40, %c0_41] : memref<128x1xf32, #tpu.memory_space<vmem>>, vector<128x1xf32>
      %cst_42 = arith.constant 0.000000e+00 : f32
      %69 = vector.broadcast %cst_42 : f32 to vector<128x1xf32>
      %70 = arith.cmpf ogt, %68, %69 : vector<128x1xf32>
      %71 = math.log %66 : vector<128x1xf32>
      %72 = arith.addf %65, %71 : vector<128x1xf32>
      %73 = arith.mulf %68, %72 : vector<128x1xf32>
      %74 = arith.subf %67, %73 : vector<128x1xf32>
      %cst_43 = arith.constant 1.000000e+00 : f32
      %75 = vector.broadcast %cst_43 : f32 to vector<128x1xf32>
      %76 = arith.select %70, %68, %75 : vector<128x1xi1>, vector<128x1xf32>
      %77 = arith.divf %74, %76 : vector<128x1xf32>
      %cst_44 = arith.constant 0.000000e+00 : f32
      %78 = vector.broadcast %cst_44 : f32 to vector<128x1xf32>
      %79 = arith.select %70, %77, %78 : vector<128x1xi1>, vector<128x1xf32>
      %cst_45 = arith.constant -1.000000e+00 : f32
      %80 = vector.broadcast %cst_45 : f32 to vector<128x1xf32>
      %81 = arith.mulf %80, %79 : vector<128x1xf32>
      %c16_i32_46 = arith.constant 16 : i32
      %82 = vector.broadcast %c16_i32_46 : i32 to vector<128x1xi32>
      %83 = arith.cmpi slt, %12, %82 : vector<128x1xi32>
      %cst_47 = arith.constant 0.000000e+00 : f32
      %84 = vector.broadcast %cst_47 : f32 to vector<128x1xf32>
      %85 = arith.select %83, %81, %84 : vector<128x1xi1>, vector<128x1xf32>
      %86 = vector.shape_cast %85 : vector<128x1xf32> to vector<1x128x1xf32>
      %cst_48 = arith.constant dense<0.000000e+00> : vector<1xf32>
      %87 = vector.multi_reduction <add>, %86, %cst_48 [1, 2] : vector<1x128x1xf32> to vector<1xf32>
      %88 = vector.shape_cast %87 : vector<1xf32> to vector<1x1x1xf32>
      %89 = vector.extract %88[0, 0, 0] : f32 from vector<1x1x1xf32>
      %90 = vector.broadcast %89 : f32 to vector<1x8x128xf32>
      %c0_49 = arith.constant 0 : index
      %c0_50 = arith.constant 0 : index
      %c0_51 = arith.constant 0 : index
      %91 = vector.load %arg6[%c0_49, %c0_50, %c0_51] : memref<1x8x128xf32, #tpu.memory_space<vmem>>, vector<1x8x128xf32>
      tpu.vector_store %arg6[%c0_49, %c0_50, %c0_51], %90 {strides = array<i32>} : memref<1x8x128xf32, #tpu.memory_space<vmem>>, vector<1x8x128xf32>,
    } else {
    }
    return
  }
  func.func @transform_0(%arg0: i32, %arg1: i32) -> (i32, i32) {
    %c0_i32 = arith.constant 0 : i32
    %c0_i32_0 = arith.constant 0 : i32
    return %arg0, %c0_i32 : i32, i32
  }
  func.func @transform_1(%arg0: i32, %arg1: i32) -> (i32, i32) {
    %c0_i32 = arith.constant 0 : i32
    %c0_i32_0 = arith.constant 0 : i32
    return %c0_i32, %arg1 : i32, i32
  }
  func.func @transform_2(%arg0: i32, %arg1: i32) -> (i32, i32) {
    %c0_i32 = arith.constant 0 : i32
    %c0_i32_0 = arith.constant 0 : i32
    return %arg0, %c0_i32 : i32, i32
  }
  func.func @transform_3(%arg0: i32, %arg1: i32) -> (i32, i32) {
    %c0_i32 = arith.constant 0 : i32
    %c0_i32_0 = arith.constant 0 : i32
    %c0_i32_1 = arith.constant 0 : i32
    return %c0_i32, %c0_i32_0 : i32, i32
  }
  func.func @transform_4(%arg0: i32, %arg1: i32) -> (i32, i32, i32) {
    %c0_i32 = arith.constant 0 : i32
    %c0_i32_0 = arith.constant 0 : i32
    %c0_i32_1 = arith.constant 0 : i32
    return %arg0, %c0_i32, %c0_i32_0 : i32, i32, i32
  }
}

</mosaic_0001>

<llo_original>
// kernel: tpu_custom_call.1
$region0: #{tpu_custom_call.1}
  #allocation0 [shape = 'u32[]', space=smem, size = 0x4, offset = 0x4, fixed_abs, tag = 'smem constant byte address 0x4 - core index']
  #allocation1 [shape = 'u32[144,128]{1,0:T(1,128)}', space=vmem, size = 0x12000, scoped, tag = 'internal scratch']
  #allocation2 [shape = 'f32[128,1]{1,0:T(8,128)}', space=vmem, size = 0x10000, scoped, tag = 'scratch operand']
  #allocation3 [shape = 'f32[128,1]{1,0:T(8,128)}', space=vmem, size = 0x10000, scoped, tag = 'scratch operand']
  #allocation4 [shape = 'f32[128,1]{1,0:T(8,128)}', space=vmem, size = 0x10000, scoped, tag = 'scratch operand']
  #allocation5 [shape = 'f32[128,1]{1,0:T(8,128)}', space=vmem, size = 0x10000, scoped, tag = 'scratch operand']
  %s0 = inlined_call_operand.vmem [shape: s32[128,1], index: 0, kind: input, shape index: {}]
  %s1 = inlined_call_operand.vmem [shape: s32[1,128], index: 1, kind: input, shape index: {}]
  %s2 = inlined_call_operand.vmem [shape: bf16[128,128], index: 2, kind: input, shape index: {}]
  %s3 = inlined_call_operand.vmem [shape: bf16[128,128], index: 3, kind: input, shape index: {}]
  %s4 = inlined_call_operand.hbm [shape: f32[1,8,128], index: 4, kind: output, shape index: {}]
  %s5 = sld [smem:[#allocation0]]
  $region34: #{tpu_custom_call.1} parent=0
    _
  %s7 = ssub.s32 1, %s5
  %s8 = scalar_select 0, %s7, %s5
  $region1: #{tpu_custom_call.1} parent=0
    #allocation6 [shape = 'u8[4096]{0}', space=vmem, size = 0x1000, scoped, tag = 'output window, operand 0, single buffered']
    #allocation7 [shape = 's32[1]{0}', space=sflag, size = 0x4, scoped, tag = 'scoped memory for tpu_custom_call.1']
    %9 = vsyncpa [#allocation7], 0
    // Predicated region
    $region2: #{tpu_custom_call.1} parent=1 // pred_check
      _
    $region3: #{tpu_custom_call.1} parent=1 // pred_check_branch
      %11 = sbr.rel (0) target = $region5
    $region4: #{tpu_custom_call.1} parent=1 // pred_region
      _
    $region5: #{tpu_custom_call.1} parent=1 // pred_fallthru
      _
    // Predicated region
    $region6: #{tpu_custom_call.1} parent=1 // pred_check
      _
    $region7: #{tpu_custom_call.1} parent=1 // pred_check_branch
      %13 = sbr.rel (0) target = $region9
    $region8: #{tpu_custom_call.1} parent=1 // pred_region
      _
    $region9: #{tpu_custom_call.1} parent=1 // pred_fallthru
      _
    // Predicated region
    $region10: #{tpu_custom_call.1} parent=1 // pred_check
      _
    $region11: #{tpu_custom_call.1} parent=1 // pred_check_branch
      %15 = sbr.rel (0) target = $region13
    $region12: #{tpu_custom_call.1} parent=1 // pred_region
      _
    $region13: #{tpu_custom_call.1} parent=1 // pred_fallthru
      _
    // Predicated region
    $region14: #{tpu_custom_call.1} parent=1 // pred_check
      _
    $region15: #{tpu_custom_call.1} parent=1 // pred_check_branch
      %17 = sbr.rel (0) target = $region17
    $region16: #{tpu_custom_call.1} parent=1 // pred_region
      _
    $region17: #{tpu_custom_call.1} parent=1 // pred_fallthru
      _
    %p19 = scmp.eq.s32.totalorder 0, 0
    // Predicated region
    $region18: #{tpu_custom_call.1} parent=1 // pred_check
      %p20 = pneg %p19
    $region19: #{tpu_custom_call.1} parent=1 // pred_check_branch
      %22 = sbr.rel (%p20) target = $region21
    $region20: #{tpu_custom_call.1} parent=1 // pred_region
      %vm23 = vcmask 7168
      %24 = vst.msk [vmem:[#allocation2] sm:$0xff] %vm23, -inf
      %25 = vst.msk [vmem:[#allocation2 + $0x8] sm:$0xff] %vm23, -inf
      %26 = vst.msk [vmem:[#allocation2 + $0x10] sm:$0xff] %vm23, -inf
      %27 = vst.msk [vmem:[#allocation2 + $0x18] sm:$0xff] %vm23, -inf
      %28 = vst.msk [vmem:[#allocation2 + $0x20] sm:$0xff] %vm23, -inf
      %29 = vst.msk [vmem:[#allocation2 + $0x28] sm:$0xff] %vm23, -inf
      %30 = vst.msk [vmem:[#allocation2 + $0x30] sm:$0xff] %vm23, -inf
      %31 = vst.msk [vmem:[#allocation2 + $0x38] sm:$0xff] %vm23, -inf
      %32 = vst.msk [vmem:[#allocation2 + $0x40] sm:$0xff] %vm23, -inf
      %33 = vst.msk [vmem:[#allocation2 + $0x48] sm:$0xff] %vm23, -inf
      %34 = vst.msk [vmem:[#allocation2 + $0x50] sm:$0xff] %vm23, -inf
      %35 = vst.msk [vmem:[#allocation2 + $0x58] sm:$0xff] %vm23, -inf
      %36 = vst.msk [vmem:[#allocation2 + $0x60] sm:$0xff] %vm23, -inf
      %37 = vst.msk [vmem:[#allocation2 + $0x68] sm:$0xff] %vm23, -inf
      %38 = vst.msk [vmem:[#allocation2 + $0x70] sm:$0xff] %vm23, -inf
      %39 = vst.msk [vmem:[#allocation2 + $0x78] sm:$0xff] %vm23, -inf
      %40 = vst.msk [vmem:[#allocation3] sm:$0xff] %vm23, 0.0
      %41 = vst.msk [vmem:[#allocation3 + $0x8] sm:$0xff] %vm23, 0.0
      %42 = vst.msk [vmem:[#allocation3 + $0x10] sm:$0xff] %vm23, 0.0
      %43 = vst.msk [vmem:[#allocation3 + $0x18] sm:$0xff] %vm23, 0.0
      %44 = vst.msk [vmem:[#allocation3 + $0x20] sm:$0xff] %vm23, 0.0
      %45 = vst.msk [vmem:[#allocation3 + $0x28] sm:$0xff] %vm23, 0.0
      %46 = vst.msk [vmem:[#allocation3 + $0x30] sm:$0xff] %vm23, 0.0
      %47 = vst.msk [vmem:[#allocation3 + $0x38] sm:$0xff] %vm23, 0.0
      %48 = vst.msk [vmem:[#allocation3 + $0x40] sm:$0xff] %vm23, 0.0
      %49 = vst.msk [vmem:[#allocation3 + $0x48] sm:$0xff] %vm23, 0.0
      %50 = vst.msk [vmem:[#allocation3 + $0x50] sm:$0xff] %vm23, 0.0
      %51 = vst.msk [vmem:[#allocation3 + $0x58] sm:$0xff] %vm23, 0.0
      %52 = vst.msk [vmem:[#allocation3 + $0x60] sm:$0xff] %vm23, 0.0
      %53 = vst.msk [vmem:[#allocation3 + $0x68] sm:$0xff] %vm23, 0.0
      %54 = vst.msk [vmem:[#allocation3 + $0x70] sm:$0xff] %vm23, 0.0
      %55 = vst.msk [vmem:[#allocation3 + $0x78] sm:$0xff] %vm23, 0.0
      %56 = vst.msk [vmem:[#allocation4] sm:$0xff] %vm23, 0.0
      %57 = vst.msk [vmem:[#allocation4 + $0x8] sm:$0xff] %vm23, 0.0
      %58 = vst.msk [vmem:[#allocation4 + $0x10] sm:$0xff] %vm23, 0.0
      %59 = vst.msk [vmem:[#allocation4 + $0x18] sm:$0xff] %vm23, 0.0
      %60 = vst.msk [vmem:[#allocation4 + $0x20] sm:$0xff] %vm23, 0.0
      %61 = vst.msk [vmem:[#allocation4 + $0x28] sm:$0xff] %vm23, 0.0
      %62 = vst.msk [vmem:[#allocation4 + $0x30] sm:$0xff] %vm23, 0.0
      %63 = vst.msk [vmem:[#allocation4 + $0x38] sm:$0xff] %vm23, 0.0
      %64 = vst.msk [vmem:[#allocation4 + $0x40] sm:$0xff] %vm23, 0.0
      %65 = vst.msk [vmem:[#allocation4 + $0x48] sm:$0xff] %vm23, 0.0
      %66 = vst.msk [vmem:[#allocation4 + $0x50] sm:$0xff] %vm23, 0.0
      %67 = vst.msk [vmem:[#allocation4 + $0x58] sm:$0xff] %vm23, 0.0
      %68 = vst.msk [vmem:[#allocation4 + $0x60] sm:$0xff] %vm23, 0.0
      %69 = vst.msk [vmem:[#allocation4 + $0x68] sm:$0xff] %vm23, 0.0
      %70 = vst.msk [vmem:[#allocation4 + $0x70] sm:$0xff] %vm23, 0.0
      %71 = vst.msk [vmem:[#allocation4 + $0x78] sm:$0xff] %vm23, 0.0
      %72 = vst.msk [vmem:[#allocation5] sm:$0xff] %vm23, 0.0
      %73 = vst.msk [vmem:[#allocation5 + $0x8] sm:$0xff] %vm23, 0.0
      %74 = vst.msk [vmem:[#allocation5 + $0x10] sm:$0xff] %vm23, 0.0
      %75 = vst.msk [vmem:[#allocation5 + $0x18] sm:$0xff] %vm23, 0.0
      %76 = vst.msk [vmem:[#allocation5 + $0x20] sm:$0xff] %vm23, 0.0
      %77 = vst.msk [vmem:[#allocation5 + $0x28] sm:$0xff] %vm23, 0.0
      %78 = vst.msk [vmem:[#allocation5 + $0x30] sm:$0xff] %vm23, 0.0
      %79 = vst.msk [vmem:[#allocation5 + $0x38] sm:$0xff] %vm23, 0.0
      %80 = vst.msk [vmem:[#allocation5 + $0x40] sm:$0xff] %vm23, 0.0
      %81 = vst.msk [vmem:[#allocation5 + $0x48] sm:$0xff] %vm23, 0.0
      %82 = vst.msk [vmem:[#allocation5 + $0x50] sm:$0xff] %vm23, 0.0
      %83 = vst.msk [vmem:[#allocation5 + $0x58] sm:$0xff] %vm23, 0.0
      %84 = vst.msk [vmem:[#allocation5 + $0x60] sm:$0xff] %vm23, 0.0
      %85 = vst.msk [vmem:[#allocation5 + $0x68] sm:$0xff] %vm23, 0.0
      %86 = vst.msk [vmem:[#allocation5 + $0x70] sm:$0xff] %vm23, 0.0
      %87 = vst.msk [vmem:[#allocation5 + $0x78] sm:$0xff] %vm23, 0.0
    $region21: #{tpu_custom_call.1} parent=1 // pred_fallthru
      _
    %s88 = smul.u32 0, 128
    %s89 = sshra.s32 %s88, 3
    %s90 = sand.u32 %s88, 7
    %s91 = smul.addr %s89, 4
    %s92 = scalar_lea.vmem %s3, %s91
    %v93 = vld [vmem:[%s92] sm:$0xf]
    %v94 = vld [vmem:[%s92 + $0x4] sm:$0xf]
    %v95 = vld [vmem:[%s92 + $0x8] sm:$0xf]
    %v96 = vld [vmem:[%s92 + $0xc] sm:$0xf]
    %v97 = vld [vmem:[%s92 + $0x10] sm:$0xf]
    %v98 = vld [vmem:[%s92 + $0x14] sm:$0xf]
    %v99 = vld [vmem:[%s92 + $0x18] sm:$0xf]
    %v100 = vld [vmem:[%s92 + $0x1c] sm:$0xf]
    %v101 = vld [vmem:[%s92 + $0x20] sm:$0xf]
    %v102 = vld [vmem:[%s92 + $0x24] sm:$0xf]
    %v103 = vld [vmem:[%s92 + $0x28] sm:$0xf]
    %v104 = vld [vmem:[%s92 + $0x2c] sm:$0xf]
    %v105 = vld [vmem:[%s92 + $0x30] sm:$0xf]
    %v106 = vld [vmem:[%s92 + $0x34] sm:$0xf]
    %v107 = vld [vmem:[%s92 + $0x38] sm:$0xf]
    %v108 = vld [vmem:[%s92 + $0x3c] sm:$0xf]
    %v109 = vld [vmem:[%s2] sm:$0xf]
    %v110 = vld [vmem:[%s2 + $0x4] sm:$0xf]
    %v111 = vld [vmem:[%s2 + $0x8] sm:$0xf]
    %v112 = vld [vmem:[%s2 + $0xc] sm:$0xf]
    %v113 = vld [vmem:[%s2 + $0x10] sm:$0xf]
    %v114 = vld [vmem:[%s2 + $0x14] sm:$0xf]
    %v115 = vld [vmem:[%s2 + $0x18] sm:$0xf]
    %v116 = vld [vmem:[%s2 + $0x1c] sm:$0xf]
    %v117 = vld [vmem:[%s2 + $0x20] sm:$0xf]
    %v118 = vld [vmem:[%s2 + $0x24] sm:$0xf]
    %v119 = vld [vmem:[%s2 + $0x28] sm:$0xf]
    %v120 = vld [vmem:[%s2 + $0x2c] sm:$0xf]
    %v121 = vld [vmem:[%s2 + $0x30] sm:$0xf]
    %v122 = vld [vmem:[%s2 + $0x34] sm:$0xf]
    %v123 = vld [vmem:[%s2 + $0x38] sm:$0xf]
    %v124 = vld [vmem:[%s2 + $0x3c] sm:$0xf]
    %v141 = vunpack.c.l.b16 %v109
    %v142 = vunpack.c.l.b16 %v110
    %v143 = vunpack.c.l.b16 %v111
    %v144 = vunpack.c.l.b16 %v112
    %v145 = vunpack.c.l.b16 %v113
    %v146 = vunpack.c.l.b16 %v114
    %v147 = vunpack.c.l.b16 %v115
    %v148 = vunpack.c.l.b16 %v116
    %v149 = vunpack.c.l.b16 %v117
    %v150 = vunpack.c.l.b16 %v118
    %v151 = vunpack.c.l.b16 %v119
    %v152 = vunpack.c.l.b16 %v120
    %v153 = vunpack.c.l.b16 %v121
    %v154 = vunpack.c.l.b16 %v122
    %v155 = vunpack.c.l.b16 %v123
    %v156 = vunpack.c.l.b16 %v124
    %v157 = vpack.c.b16 %v142, %v141
    %v158 = vpack.c.b16 %v144, %v143
    %v159 = vpack.c.b16 %v146, %v145
    %v160 = vpack.c.b16 %v148, %v147
    %v161 = vpack.c.b16 %v150, %v149
    %v162 = vpack.c.b16 %v152, %v151
    %v163 = vpack.c.b16 %v154, %v153
    %v164 = vpack.c.b16 %v156, %v155
    %v189 = vunpack.c.l.b16 %v93
    %v190 = vunpack.c.l.b16 %v94
    %v191 = vunpack.c.l.b16 %v95
    %v192 = vunpack.c.l.b16 %v96
    %v193 = vunpack.c.l.b16 %v97
    %v194 = vunpack.c.l.b16 %v98
    %v195 = vunpack.c.l.b16 %v99
    %v196 = vunpack.c.l.b16 %v100
    %v197 = vunpack.c.l.b16 %v101
    %v198 = vunpack.c.l.b16 %v102
    %v199 = vunpack.c.l.b16 %v103
    %v200 = vunpack.c.l.b16 %v104
    %v201 = vunpack.c.l.b16 %v105
    %v202 = vunpack.c.l.b16 %v106
    %v203 = vunpack.c.l.b16 %v107
    %v204 = vunpack.c.l.b16 %v108
    %v205 = vpack.c.b16 %v190, %v189
    %v206 = vpack.c.b16 %v192, %v191
    %v207 = vpack.c.b16 %v194, %v193
    %v208 = vpack.c.b16 %v196, %v195
    %v209 = vpack.c.b16 %v198, %v197
    %v210 = vpack.c.b16 %v200, %v199
    %v211 = vpack.c.b16 %v202, %v201
    %v212 = vpack.c.b16 %v204, %v203
    %221 = vmatprep.subr.bf16.mxu0 0
    %222 = vmatpush1.bf16.xpose.msra.mxu0 %v212
    %223 = vmatprep.subr.bf16.mxu0 0
    %224 = vmatpush1.bf16.xpose.msra.mxu0 %v211
    %225 = vmatprep.subr.bf16.mxu0 0
    %226 = vmatpush1.bf16.xpose.msra.mxu0 %v210
    %227 = vmatprep.subr.bf16.mxu0 0
    %228 = vmatpush1.bf16.xpose.msra.mxu0 %v209
    %229 = vmatprep.subr.bf16.mxu0 0
    %230 = vmatpush1.bf16.xpose.msra.mxu0 %v208
    %231 = vmatprep.subr.bf16.mxu0 0
    %232 = vmatpush1.bf16.xpose.msra.mxu0 %v207
    %233 = vmatprep.subr.bf16.mxu0 0
    %234 = vmatpush1.bf16.xpose.msra.mxu0 %v206
    %235 = vmatprep.subr.bf16.mxu0 0
    %236 = vmatpush1.bf16.xpose.msra.mxu0 %v205
    %237 = vmatprep.subr.bf16.mxu0 0
    %238 = vmatpush2.bf16.xpose.msra.mxu0 0
    %239 = vmatprep.subr.bf16.mxu0 0
    %240 = vmatpush2.bf16.xpose.msra.mxu0 0
    %241 = vmatprep.subr.bf16.mxu0 0
    %242 = vmatpush2.bf16.xpose.msra.mxu0 0
    %243 = vmatprep.subr.bf16.mxu0 0
    %244 = vmatpush2.bf16.xpose.msra.mxu0 0
    %245 = vmatprep.subr.bf16.mxu0 0
    %246 = vmatpush2.bf16.xpose.msra.mxu0 0
    %247 = vmatprep.subr.bf16.mxu0 0
    %248 = vmatpush2.bf16.xpose.msra.mxu0 0
    %249 = vmatprep.subr.bf16.mxu0 0
    %250 = vmatpush2.bf16.xpose.msra.mxu0 0
    %251 = vmatprep.subr.bf16.mxu0 0
    %252 = vmatpush2.bf16.xpose.msra.mxu0 0
    %253 = vmatprep.mubr.bf16.mxu0 0
    %254 = vmatmul.mubr.bf16.gmra.mxu0 %v157
    %v255 = vpop.f32.mrf.mxu0
    %v256 = vadd.f32 0.0, %v255
    %v257 = vpop.f32.mrf.mxu0
    %v258 = vpop.f32.mrf.mxu0
    %v259 = vadd.f32 0.0, %v258
    %v260 = vpop.f32.mrf.mxu0
    %261 = vmatprep.mubr.bf16.mxu0 0
    %262 = vmatmul.mubr.bf16.gmra.mxu0 %v158
    %v263 = vpop.f32.mrf.mxu0
    %v264 = vadd.f32 0.0, %v263
    %v265 = vpop.f32.mrf.mxu0
    %v266 = vpop.f32.mrf.mxu0
    %v267 = vadd.f32 0.0, %v266
    %v268 = vpop.f32.mrf.mxu0
    %269 = vmatprep.mubr.bf16.mxu0 0
    %270 = vmatmul.mubr.bf16.gmra.mxu0 %v159
    %v271 = vpop.f32.mrf.mxu0
    %v272 = vadd.f32 0.0, %v271
    %v273 = vpop.f32.mrf.mxu0
    %v274 = vpop.f32.mrf.mxu0
    %v275 = vadd.f32 0.0, %v274
    %v276 = vpop.f32.mrf.mxu0
    %277 = vmatprep.mubr.bf16.mxu0 0
    %278 = vmatmul.mubr.bf16.gmra.mxu0 %v160
    %v279 = vpop.f32.mrf.mxu0
    %v280 = vadd.f32 0.0, %v279
    %v281 = vpop.f32.mrf.mxu0
    %v282 = vpop.f32.mrf.mxu0
    %v283 = vadd.f32 0.0, %v282
    %v284 = vpop.f32.mrf.mxu0
    %285 = vmatprep.mubr.bf16.mxu0 0
    %286 = vmatmul.mubr.bf16.gmra.mxu0 %v161
    %v287 = vpop.f32.mrf.mxu0
    %v288 = vadd.f32 0.0, %v287
    %v289 = vpop.f32.mrf.mxu0
    %v290 = vpop.f32.mrf.mxu0
    %v291 = vadd.f32 0.0, %v290
    %v292 = vpop.f32.mrf.mxu0
    %293 = vmatprep.mubr.bf16.mxu0 0
    %294 = vmatmul.mubr.bf16.gmra.mxu0 %v162
    %v295 = vpop.f32.mrf.mxu0
    %v296 = vadd.f32 0.0, %v295
    %v297 = vpop.f32.mrf.mxu0
    %v298 = vpop.f32.mrf.mxu0
    %v299 = vadd.f32 0.0, %v298
    %v300 = vpop.f32.mrf.mxu0
    %301 = vmatprep.mubr.bf16.mxu0 0
    %302 = vmatmul.mubr.bf16.gmra.mxu0 %v163
    %v303 = vpop.f32.mrf.mxu0
    %v304 = vadd.f32 0.0, %v303
    %v305 = vpop.f32.mrf.mxu0
    %v306 = vpop.f32.mrf.mxu0
    %v307 = vadd.f32 0.0, %v306
    %v308 = vpop.f32.mrf.mxu0
    %309 = vmatprep.mubr.bf16.mxu0 0
    %310 = vmatmul.mubr.bf16.gmra.mxu0 %v164
    %v311 = vpop.f32.mrf.mxu0
    %v312 = vadd.f32 0.0, %v311
    %v313 = vpop.f32.mrf.mxu0
    %v314 = vpop.f32.mrf.mxu0
    %v315 = vadd.f32 0.0, %v314
    %v316 = vpop.f32.mrf.mxu0
    %317 = vdwg.mxu0
    %s318 = smul.u32 0, 128
    %v319 = vlaneseq
    %v320 = vshrl.u32 %v319, 7
    %v321 = vadd.s32 %v320, 8
    %v322 = vadd.s32 %v320, 16
    %v323 = vadd.s32 %v320, 24
    %v324 = vadd.s32 %v320, 32
    %v325 = vadd.s32 %v320, 40
    %v326 = vadd.s32 %v320, 48
    %v327 = vadd.s32 %v320, 56
    %v328 = vadd.s32 %v320, 64
    %v329 = vadd.s32 %v320, 72
    %v330 = vadd.s32 %v320, 80
    %v331 = vadd.s32 %v320, 88
    %v332 = vadd.s32 %v320, 96
    %v333 = vadd.s32 %v320, 104
    %v334 = vadd.s32 %v320, 112
    %v335 = vadd.s32 %v320, 120
    %v336 = vstv %s318
    %v337 = vadd.s32 %v336, %v320
    %v338 = vadd.s32 %v336, %v321
    %v339 = vadd.s32 %v336, %v322
    %v340 = vadd.s32 %v336, %v323
    %v341 = vadd.s32 %v336, %v324
    %v342 = vadd.s32 %v336, %v325
    %v343 = vadd.s32 %v336, %v326
    %v344 = vadd.s32 %v336, %v327
    %v345 = vadd.s32 %v336, %v328
    %v346 = vadd.s32 %v336, %v329
    %v347 = vadd.s32 %v336, %v330
    %v348 = vadd.s32 %v336, %v331
    %v349 = vadd.s32 %v336, %v332
    %v350 = vadd.s32 %v336, %v333
    %v351 = vadd.s32 %v336, %v334
    %v352 = vadd.s32 %v336, %v335
    %v353 = vlaneseq
    %v354 = vand.u32 %v353, 127
    %v355 = vstv %s88
    %v356 = vadd.s32 %v355, %v354
    %vm357 = vcmp.ne.s32.totalorder %v337, %v356
    %vm358 = vcmp.ne.s32.totalorder %v338, %v356
    %vm359 = vcmp.ne.s32.totalorder %v339, %v356
    %vm360 = vcmp.ne.s32.totalorder %v340, %v356
    %vm361 = vcmp.ne.s32.totalorder %v341, %v356
    %vm362 = vcmp.ne.s32.totalorder %v342, %v356
    %vm363 = vcmp.ne.s32.totalorder %v343, %v356
    %vm364 = vcmp.ne.s32.totalorder %v344, %v356
    %vm365 = vcmp.ne.s32.totalorder %v345, %v356
    %vm366 = vcmp.ne.s32.totalorder %v346, %v356
    %vm367 = vcmp.ne.s32.totalorder %v347, %v356
    %vm368 = vcmp.ne.s32.totalorder %v348, %v356
    %vm369 = vcmp.ne.s32.totalorder %v349, %v356
    %vm370 = vcmp.ne.s32.totalorder %v350, %v356
    %vm371 = vcmp.ne.s32.totalorder %v351, %v356
    %vm372 = vcmp.ne.s32.totalorder %v352, %v356
    %vm373 = vcmp.lt.s32.totalorder %v356, 16
    %v374 = vsel %vm373, 1, 0
    %vm375 = vcmp.eq.s32.totalorder %v374, 1
    %vm376 = vmand %vm357, %vm375
    %vm377 = vmand %vm358, %vm375
    %vm378 = vmand %vm359, %vm375
    %vm379 = vmand %vm360, %vm375
    %vm380 = vmand %vm361, %vm375
    %vm381 = vmand %vm362, %vm375
    %vm382 = vmand %vm363, %vm375
    %vm383 = vmand %vm364, %vm375
    %vm384 = vmand %vm365, %vm375
    %vm385 = vmand %vm366, %vm375
    %vm386 = vmand %vm367, %vm375
    %vm387 = vmand %vm368, %vm375
    %vm388 = vmand %vm369, %vm375
    %vm389 = vmand %vm370, %vm375
    %vm390 = vmand %vm371, %vm375
    %vm391 = vmand %vm372, %vm375
    %v392 = vld [vmem:[%s0] sm:$0xff]
    %v393 = vld [vmem:[%s0 + $0x8] sm:$0xff]
    %v394 = vld [vmem:[%s0 + $0x10] sm:$0xff]
    %v395 = vld [vmem:[%s0 + $0x18] sm:$0xff]
    %v396 = vld [vmem:[%s0 + $0x20] sm:$0xff]
    %v397 = vld [vmem:[%s0 + $0x28] sm:$0xff]
    %v398 = vld [vmem:[%s0 + $0x30] sm:$0xff]
    %v399 = vld [vmem:[%s0 + $0x38] sm:$0xff]
    %v400 = vld [vmem:[%s0 + $0x40] sm:$0xff]
    %v401 = vld [vmem:[%s0 + $0x48] sm:$0xff]
    %v402 = vld [vmem:[%s0 + $0x50] sm:$0xff]
    %v403 = vld [vmem:[%s0 + $0x58] sm:$0xff]
    %v404 = vld [vmem:[%s0 + $0x60] sm:$0xff]
    %v405 = vld [vmem:[%s0 + $0x68] sm:$0xff]
    %v406 = vld [vmem:[%s0 + $0x70] sm:$0xff]
    %v407 = vld [vmem:[%s0 + $0x78] sm:$0xff]
    %v408 = vld [vmem:[%s1] sm:$0x1]
    %409 = vset.pattern.permute.xlu0 0
    %410 = vperm.xlu0 %409, %v392
    %v411 = vpop.permute.xlu0 %410
    %412 = vset.pattern.permute.xlu0 0
    %413 = vperm.xlu0 %412, %v393
    %v414 = vpop.permute.xlu0 %413
    %415 = vset.pattern.permute.xlu0 0
    %416 = vperm.xlu0 %415, %v394
    %v417 = vpop.permute.xlu0 %416
    %418 = vset.pattern.permute.xlu0 0
    %419 = vperm.xlu0 %418, %v395
    %v420 = vpop.permute.xlu0 %419
    %421 = vset.pattern.permute.xlu0 0
    %422 = vperm.xlu0 %421, %v396
    %v423 = vpop.permute.xlu0 %422
    %424 = vset.pattern.permute.xlu0 0
    %425 = vperm.xlu0 %424, %v397
    %v426 = vpop.permute.xlu0 %425
    %427 = vset.pattern.permute.xlu0 0
    %428 = vperm.xlu0 %427, %v398
    %v429 = vpop.permute.xlu0 %428
    %430 = vset.pattern.permute.xlu0 0
    %431 = vperm.xlu0 %430, %v399
    %v432 = vpop.permute.xlu0 %431
    %433 = vset.pattern.permute.xlu0 0
    %434 = vperm.xlu0 %433, %v400
    %v435 = vpop.permute.xlu0 %434
    %436 = vset.pattern.permute.xlu0 0
    %437 = vperm.xlu0 %436, %v401
    %v438 = vpop.permute.xlu0 %437
    %439 = vset.pattern.permute.xlu0 0
    %440 = vperm.xlu0 %439, %v402
    %v441 = vpop.permute.xlu0 %440
    %442 = vset.pattern.permute.xlu0 0
    %443 = vperm.xlu0 %442, %v403
    %v444 = vpop.permute.xlu0 %443
    %445 = vset.pattern.permute.xlu0 0
    %446 = vperm.xlu0 %445, %v404
    %v447 = vpop.permute.xlu0 %446
    %448 = vset.pattern.permute.xlu0 0
    %449 = vperm.xlu0 %448, %v405
    %v450 = vpop.permute.xlu0 %449
    %451 = vset.pattern.permute.xlu0 0
    %452 = vperm.xlu0 %451, %v406
    %v453 = vpop.permute.xlu0 %452
    %454 = vset.pattern.permute.xlu0 0
    %455 = vperm.xlu0 %454, %v407
    %v456 = vpop.permute.xlu0 %455
    %v457 = vlaneseq
    %v458 = vshrl.u32 %v457, 7
    %v459 = vsub.s32 0, %v458
    %v460 = vrot.slane %v408, %v459
    %vm461 = vcmp.eq.s32.totalorder %v411, %v460
    %vm462 = vcmp.eq.s32.totalorder %v414, %v460
    %vm463 = vcmp.eq.s32.totalorder %v417, %v460
    %vm464 = vcmp.eq.s32.totalorder %v420, %v460
    %vm465 = vcmp.eq.s32.totalorder %v423, %v460
    %vm466 = vcmp.eq.s32.totalorder %v426, %v460
    %vm467 = vcmp.eq.s32.totalorder %v429, %v460
    %vm468 = vcmp.eq.s32.totalorder %v432, %v460
    %vm469 = vcmp.eq.s32.totalorder %v435, %v460
    %vm470 = vcmp.eq.s32.totalorder %v438, %v460
    %vm471 = vcmp.eq.s32.totalorder %v441, %v460
    %vm472 = vcmp.eq.s32.totalorder %v444, %v460
    %vm473 = vcmp.eq.s32.totalorder %v447, %v460
    %vm474 = vcmp.eq.s32.totalorder %v450, %v460
    %vm475 = vcmp.eq.s32.totalorder %v453, %v460
    %vm476 = vcmp.eq.s32.totalorder %v456, %v460
    %vm477 = vmand %vm461, %vm376
    %vm478 = vmand %vm462, %vm377
    %vm479 = vmand %vm463, %vm378
    %vm480 = vmand %vm464, %vm379
    %vm481 = vmand %vm465, %vm380
    %vm482 = vmand %vm466, %vm381
    %vm483 = vmand %vm467, %vm382
    %vm484 = vmand %vm468, %vm383
    %vm485 = vmand %vm469, %vm384
    %vm486 = vmand %vm470, %vm385
    %vm487 = vmand %vm471, %vm386
    %vm488 = vmand %vm472, %vm387
    %vm489 = vmand %vm473, %vm388
    %vm490 = vmand %vm474, %vm389
    %vm491 = vmand %vm475, %vm390
    %vm492 = vmand %vm476, %vm391
    %v493 = vsel %vm477, 1.0, 0.0
    %v494 = vsel %vm478, 1.0, 0.0
    %v495 = vsel %vm479, 1.0, 0.0
    %v496 = vsel %vm480, 1.0, 0.0
    %v497 = vsel %vm481, 1.0, 0.0
    %v498 = vsel %vm482, 1.0, 0.0
    %v499 = vsel %vm483, 1.0, 0.0
    %v500 = vsel %vm484, 1.0, 0.0
    %v501 = vsel %vm485, 1.0, 0.0
    %v502 = vsel %vm486, 1.0, 0.0
    %v503 = vsel %vm487, 1.0, 0.0
    %v504 = vsel %vm488, 1.0, 0.0
    %v505 = vsel %vm489, 1.0, 0.0
    %v506 = vsel %vm490, 1.0, 0.0
    %v507 = vsel %vm491, 1.0, 0.0
    %v508 = vsel %vm492, 1.0, 0.0
    %v509 = vld [vmem:[#allocation2] sm:$0xff]
    %v510 = vld [vmem:[#allocation2 + $0x8] sm:$0xff]
    %v511 = vld [vmem:[#allocation2 + $0x10] sm:$0xff]
    %v512 = vld [vmem:[#allocation2 + $0x18] sm:$0xff]
    %v513 = vld [vmem:[#allocation2 + $0x20] sm:$0xff]
    %v514 = vld [vmem:[#allocation2 + $0x28] sm:$0xff]
    %v515 = vld [vmem:[#allocation2 + $0x30] sm:$0xff]
    %v516 = vld [vmem:[#allocation2 + $0x38] sm:$0xff]
    %v517 = vld [vmem:[#allocation2 + $0x40] sm:$0xff]
    %v518 = vld [vmem:[#allocation2 + $0x48] sm:$0xff]
    %v519 = vld [vmem:[#allocation2 + $0x50] sm:$0xff]
    %v520 = vld [vmem:[#allocation2 + $0x58] sm:$0xff]
    %v521 = vld [vmem:[#allocation2 + $0x60] sm:$0xff]
    %v522 = vld [vmem:[#allocation2 + $0x68] sm:$0xff]
    %v523 = vld [vmem:[#allocation2 + $0x70] sm:$0xff]
    %v524 = vld [vmem:[#allocation2 + $0x78] sm:$0xff]
    %525 = vmax.xlane.f32.xlu0 %v256
    %v526 = vpop.xlane.xlu0 %525
    %527 = vmax.xlane.f32.xlu0 %v259
    %v528 = vpop.xlane.xlu0 %527
    %529 = vmax.xlane.f32.xlu0 %v264
    %v530 = vpop.xlane.xlu0 %529
    %531 = vmax.xlane.f32.xlu0 %v267
    %v532 = vpop.xlane.xlu0 %531
    %533 = vmax.xlane.f32.xlu0 %v272
    %v534 = vpop.xlane.xlu0 %533
    %535 = vmax.xlane.f32.xlu0 %v275
    %v536 = vpop.xlane.xlu0 %535
    %537 = vmax.xlane.f32.xlu0 %v280
    %v538 = vpop.xlane.xlu0 %537
    %539 = vmax.xlane.f32.xlu0 %v283
    %v540 = vpop.xlane.xlu0 %539
    %541 = vmax.xlane.f32.xlu0 %v288
    %v542 = vpop.xlane.xlu0 %541
    %543 = vmax.xlane.f32.xlu0 %v291
    %v544 = vpop.xlane.xlu0 %543
    %545 = vmax.xlane.f32.xlu0 %v296
    %v546 = vpop.xlane.xlu0 %545
    %547 = vmax.xlane.f32.xlu0 %v299
    %v548 = vpop.xlane.xlu0 %547
    %549 = vmax.xlane.f32.xlu0 %v304
    %v550 = vpop.xlane.xlu0 %549
    %551 = vmax.xlane.f32.xlu0 %v307
    %v552 = vpop.xlane.xlu0 %551
    %553 = vmax.xlane.f32.xlu0 %v312
    %v554 = vpop.xlane.xlu0 %553
    %555 = vmax.xlane.f32.xlu0 %v315
    %v556 = vpop.xlane.xlu0 %555
    %v557 = vmax.f32 %v509, %v526
    %v558 = vmax.f32 %v510, %v528
    %v559 = vmax.f32 %v511, %v530
    %v560 = vmax.f32 %v512, %v532
    %v561 = vmax.f32 %v513, %v534
    %v562 = vmax.f32 %v514, %v536
    %v563 = vmax.f32 %v515, %v538
    %v564 = vmax.f32 %v516, %v540
    %v565 = vmax.f32 %v517, %v542
    %v566 = vmax.f32 %v518, %v544
    %v567 = vmax.f32 %v519, %v546
    %v568 = vmax.f32 %v520, %v548
    %v569 = vmax.f32 %v521, %v550
    %v570 = vmax.f32 %v522, %v552
    %v571 = vmax.f32 %v523, %v554
    %v572 = vmax.f32 %v524, %v556
    %v573 = vsub.f32 %v509, %v557
    %v574 = vsub.f32 %v510, %v558
    %v575 = vsub.f32 %v511, %v559
    %v576 = vsub.f32 %v512, %v560
    %v577 = vsub.f32 %v513, %v561
    %v578 = vsub.f32 %v514, %v562
    %v579 = vsub.f32 %v515, %v563
    %v580 = vsub.f32 %v516, %v564
    %v581 = vsub.f32 %v517, %v565
    %v582 = vsub.f32 %v518, %v566
    %v583 = vsub.f32 %v519, %v567
    %v584 = vsub.f32 %v520, %v568
    %v585 = vsub.f32 %v521, %v569
    %v586 = vsub.f32 %v522, %v570
    %v587 = vsub.f32 %v523, %v571
    %v588 = vsub.f32 %v524, %v572
    %v589 = vmul.f32 %v573, 1.442695
    %v590 = vpow.pop %v589
    %v591 = vmul.f32 %v574, 1.442695
    %v592 = vpow.pop %v591
    %v593 = vmul.f32 %v575, 1.442695
    %v594 = vpow.pop %v593
    %v595 = vmul.f32 %v576, 1.442695
    %v596 = vpow.pop %v595
    %v597 = vmul.f32 %v577, 1.442695
    %v598 = vpow.pop %v597
    %v599 = vmul.f32 %v578, 1.442695
    %v600 = vpow.pop %v599
    %v601 = vmul.f32 %v579, 1.442695
    %v602 = vpow.pop %v601
    %v603 = vmul.f32 %v580, 1.442695
    %v604 = vpow.pop %v603
    %v605 = vmul.f32 %v581, 1.442695
    %v606 = vpow.pop %v605
    %v607 = vmul.f32 %v582, 1.442695
    %v608 = vpow.pop %v607
    %v609 = vmul.f32 %v583, 1.442695
    %v610 = vpow.pop %v609
    %v611 = vmul.f32 %v584, 1.442695
    %v612 = vpow.pop %v611
    %v613 = vmul.f32 %v585, 1.442695
    %v614 = vpow.pop %v613
    %v615 = vmul.f32 %v586, 1.442695
    %v616 = vpow.pop %v615
    %v617 = vmul.f32 %v587, 1.442695
    %v618 = vpow.pop %v617
    %v619 = vmul.f32 %v588, 1.442695
    %v620 = vpow.pop %v619
    %v621 = vsel %vm376, %v256, -inf
    %v622 = vsel %vm377, %v259, -inf
    %v623 = vsel %vm378, %v264, -inf
    %v624 = vsel %vm379, %v267, -inf
    %v625 = vsel %vm380, %v272, -inf
    %v626 = vsel %vm381, %v275, -inf
    %v627 = vsel %vm382, %v280, -inf
    %v628 = vsel %vm383, %v283, -inf
    %v629 = vsel %vm384, %v288, -inf
    %v630 = vsel %vm385, %v291, -inf
    %v631 = vsel %vm386, %v296, -inf
    %v632 = vsel %vm387, %v299, -inf
    %v633 = vsel %vm388, %v304, -inf
    %v634 = vsel %vm389, %v307, -inf
    %v635 = vsel %vm390, %v312, -inf
    %v636 = vsel %vm391, %v315, -inf
    %v637 = vld [vmem:[#allocation3] sm:$0xff]
    %v638 = vld [vmem:[#allocation3 + $0x8] sm:$0xff]
    %v639 = vld [vmem:[#allocation3 + $0x10] sm:$0xff]
    %v640 = vld [vmem:[#allocation3 + $0x18] sm:$0xff]
    %v641 = vld [vmem:[#allocation3 + $0x20] sm:$0xff]
    %v642 = vld [vmem:[#allocation3 + $0x28] sm:$0xff]
    %v643 = vld [vmem:[#allocation3 + $0x30] sm:$0xff]
    %v644 = vld [vmem:[#allocation3 + $0x38] sm:$0xff]
    %v645 = vld [vmem:[#allocation3 + $0x40] sm:$0xff]
    %v646 = vld [vmem:[#allocation3 + $0x48] sm:$0xff]
    %v647 = vld [vmem:[#allocation3 + $0x50] sm:$0xff]
    %v648 = vld [vmem:[#allocation3 + $0x58] sm:$0xff]
    %v649 = vld [vmem:[#allocation3 + $0x60] sm:$0xff]
    %v650 = vld [vmem:[#allocation3 + $0x68] sm:$0xff]
    %v651 = vld [vmem:[#allocation3 + $0x70] sm:$0xff]
    %v652 = vld [vmem:[#allocation3 + $0x78] sm:$0xff]
    %v653 = vmul.f32 %v590, %v637
    %v654 = vmul.f32 %v592, %v638
    %v655 = vmul.f32 %v594, %v639
    %v656 = vmul.f32 %v596, %v640
    %v657 = vmul.f32 %v598, %v641
    %v658 = vmul.f32 %v600, %v642
    %v659 = vmul.f32 %v602, %v643
    %v660 = vmul.f32 %v604, %v644
    %v661 = vmul.f32 %v606, %v645
    %v662 = vmul.f32 %v608, %v646
    %v663 = vmul.f32 %v610, %v647
    %v664 = vmul.f32 %v612, %v648
    %v665 = vmul.f32 %v614, %v649
    %v666 = vmul.f32 %v616, %v650
    %v667 = vmul.f32 %v618, %v651
    %v668 = vmul.f32 %v620, %v652
    %670 = vset.pattern.permute.xlu0 0
    %671 = vperm.xlu0 %670, %v557
    %v672 = vpop.permute.xlu0 %671
    %675 = vset.pattern.permute.xlu0 0
    %676 = vperm.xlu0 %675, %v558
    %v677 = vpop.permute.xlu0 %676
    %680 = vset.pattern.permute.xlu0 0
    %681 = vperm.xlu0 %680, %v559
    %v682 = vpop.permute.xlu0 %681
    %685 = vset.pattern.permute.xlu0 0
    %686 = vperm.xlu0 %685, %v560
    %v687 = vpop.permute.xlu0 %686
    %690 = vset.pattern.permute.xlu0 0
    %691 = vperm.xlu0 %690, %v561
    %v692 = vpop.permute.xlu0 %691
    %695 = vset.pattern.permute.xlu0 0
    %696 = vperm.xlu0 %695, %v562
    %v697 = vpop.permute.xlu0 %696
    %700 = vset.pattern.permute.xlu0 0
    %701 = vperm.xlu0 %700, %v563
    %v702 = vpop.permute.xlu0 %701
    %705 = vset.pattern.permute.xlu0 0
    %706 = vperm.xlu0 %705, %v564
    %v707 = vpop.permute.xlu0 %706
    %710 = vset.pattern.permute.xlu0 0
    %711 = vperm.xlu0 %710, %v565
    %v712 = vpop.permute.xlu0 %711
    %715 = vset.pattern.permute.xlu0 0
    %716 = vperm.xlu0 %715, %v566
    %v717 = vpop.permute.xlu0 %716
    %720 = vset.pattern.permute.xlu0 0
    %721 = vperm.xlu0 %720, %v567
    %v722 = vpop.permute.xlu0 %721
    %725 = vset.pattern.permute.xlu0 0
    %726 = vperm.xlu0 %725, %v568
    %v727 = vpop.permute.xlu0 %726
    %730 = vset.pattern.permute.xlu0 0
    %731 = vperm.xlu0 %730, %v569
    %v732 = vpop.permute.xlu0 %731
    %735 = vset.pattern.permute.xlu0 0
    %736 = vperm.xlu0 %735, %v570
    %v737 = vpop.permute.xlu0 %736
    %740 = vset.pattern.permute.xlu0 0
    %741 = vperm.xlu0 %740, %v571
    %v742 = vpop.permute.xlu0 %741
    %745 = vset.pattern.permute.xlu0 0
    %746 = vperm.xlu0 %745, %v572
    %v747 = vpop.permute.xlu0 %746
    %v749 = vsub.f32 %v621, %v672
    %v750 = vsub.f32 %v622, %v677
    %v751 = vsub.f32 %v623, %v682
    %v752 = vsub.f32 %v624, %v687
    %v753 = vsub.f32 %v625, %v692
    %v754 = vsub.f32 %v626, %v697
    %v755 = vsub.f32 %v627, %v702
    %v756 = vsub.f32 %v628, %v707
    %v757 = vsub.f32 %v629, %v712
    %v758 = vsub.f32 %v630, %v717
    %v759 = vsub.f32 %v631, %v722
    %v760 = vsub.f32 %v632, %v727
    %v761 = vsub.f32 %v633, %v732
    %v762 = vsub.f32 %v634, %v737
    %v763 = vsub.f32 %v635, %v742
    %v764 = vsub.f32 %v636, %v747
    %v765 = vmul.f32 %v749, 1.442695
    %v766 = vpow.pop %v765
    %v767 = vmul.f32 %v750, 1.442695
    %v768 = vpow.pop %v767
    %v769 = vmul.f32 %v751, 1.442695
    %v770 = vpow.pop %v769
    %v771 = vmul.f32 %v752, 1.442695
    %v772 = vpow.pop %v771
    %v773 = vmul.f32 %v753, 1.442695
    %v774 = vpow.pop %v773
    %v775 = vmul.f32 %v754, 1.442695
    %v776 = vpow.pop %v775
    %v777 = vmul.f32 %v755, 1.442695
    %v778 = vpow.pop %v777
    %v779 = vmul.f32 %v756, 1.442695
    %v780 = vpow.pop %v779
    %v781 = vmul.f32 %v757, 1.442695
    %v782 = vpow.pop %v781
    %v783 = vmul.f32 %v758, 1.442695
    %v784 = vpow.pop %v783
    %v785 = vmul.f32 %v759, 1.442695
    %v786 = vpow.pop %v785
    %v787 = vmul.f32 %v760, 1.442695
    %v788 = vpow.pop %v787
    %v789 = vmul.f32 %v761, 1.442695
    %v790 = vpow.pop %v789
    %v791 = vmul.f32 %v762, 1.442695
    %v792 = vpow.pop %v791
    %v793 = vmul.f32 %v763, 1.442695
    %v794 = vpow.pop %v793
    %v795 = vmul.f32 %v764, 1.442695
    %v796 = vpow.pop %v795
    %797 = vadd.xlane.f32.xlu0 %v766
    %v798 = vpop.xlane.xlu0 %797
    %799 = vadd.xlane.f32.xlu0 %v768
    %v800 = vpop.xlane.xlu0 %799
    %801 = vadd.xlane.f32.xlu0 %v770
    %v802 = vpop.xlane.xlu0 %801
    %803 = vadd.xlane.f32.xlu0 %v772
    %v804 = vpop.xlane.xlu0 %803
    %805 = vadd.xlane.f32.xlu0 %v774
    %v806 = vpop.xlane.xlu0 %805
    %807 = vadd.xlane.f32.xlu0 %v776
    %v808 = vpop.xlane.xlu0 %807
    %809 = vadd.xlane.f32.xlu0 %v778
    %v810 = vpop.xlane.xlu0 %809
    %811 = vadd.xlane.f32.xlu0 %v780
    %v812 = vpop.xlane.xlu0 %811
    %813 = vadd.xlane.f32.xlu0 %v782
    %v814 = vpop.xlane.xlu0 %813
    %815 = vadd.xlane.f32.xlu0 %v784
    %v816 = vpop.xlane.xlu0 %815
    %817 = vadd.xlane.f32.xlu0 %v786
    %v818 = vpop.xlane.xlu0 %817
    %819 = vadd.xlane.f32.xlu0 %v788
    %v820 = vpop.xlane.xlu0 %819
    %821 = vadd.xlane.f32.xlu0 %v790
    %v822 = vpop.xlane.xlu0 %821
    %823 = vadd.xlane.f32.xlu0 %v792
    %v824 = vpop.xlane.xlu0 %823
    %825 = vadd.xlane.f32.xlu0 %v794
    %v826 = vpop.xlane.xlu0 %825
    %827 = vadd.xlane.f32.xlu0 %v796
    %v828 = vpop.xlane.xlu0 %827
    %v829 = vadd.f32 %v653, %v798
    %v830 = vadd.f32 %v654, %v800
    %v831 = vadd.f32 %v655, %v802
    %v832 = vadd.f32 %v656, %v804
    %v833 = vadd.f32 %v657, %v806
    %v834 = vadd.f32 %v658, %v808
    %v835 = vadd.f32 %v659, %v810
    %v836 = vadd.f32 %v660, %v812
    %v837 = vadd.f32 %v661, %v814
    %v838 = vadd.f32 %v662, %v816
    %v839 = vadd.f32 %v663, %v818
    %v840 = vadd.f32 %v664, %v820
    %v841 = vadd.f32 %v665, %v822
    %v842 = vadd.f32 %v666, %v824
    %v843 = vadd.f32 %v667, %v826
    %v844 = vadd.f32 %v668, %v828
    %vm845 = vcmask 7168
    %846 = vst.msk [vmem:[#allocation3] sm:$0xff] %vm845, %v829
    %847 = vst.msk [vmem:[#allocation3 + $0x8] sm:$0xff] %vm845, %v830
    %848 = vst.msk [vmem:[#allocation3 + $0x10] sm:$0xff] %vm845, %v831
    %849 = vst.msk [vmem:[#allocation3 + $0x18] sm:$0xff] %vm845, %v832
    %850 = vst.msk [vmem:[#allocation3 + $0x20] sm:$0xff] %vm845, %v833
    %851 = vst.msk [vmem:[#allocation3 + $0x28] sm:$0xff] %vm845, %v834
    %852 = vst.msk [vmem:[#allocation3 + $0x30] sm:$0xff] %vm845, %v835
    %853 = vst.msk [vmem:[#allocation3 + $0x38] sm:$0xff] %vm845, %v836
    %854 = vst.msk [vmem:[#allocation3 + $0x40] sm:$0xff] %vm845, %v837
    %855 = vst.msk [vmem:[#allocation3 + $0x48] sm:$0xff] %vm845, %v838
    %856 = vst.msk [vmem:[#allocation3 + $0x50] sm:$0xff] %vm845, %v839
    %857 = vst.msk [vmem:[#allocation3 + $0x58] sm:$0xff] %vm845, %v840
    %858 = vst.msk [vmem:[#allocation3 + $0x60] sm:$0xff] %vm845, %v841
    %859 = vst.msk [vmem:[#allocation3 + $0x68] sm:$0xff] %vm845, %v842
    %860 = vst.msk [vmem:[#allocation3 + $0x70] sm:$0xff] %vm845, %v843
    %861 = vst.msk [vmem:[#allocation3 + $0x78] sm:$0xff] %vm845, %v844
    %v862 = vld [vmem:[#allocation4] sm:$0xff]
    %v863 = vld [vmem:[#allocation4 + $0x8] sm:$0xff]
    %v864 = vld [vmem:[#allocation4 + $0x10] sm:$0xff]
    %v865 = vld [vmem:[#allocation4 + $0x18] sm:$0xff]
    %v866 = vld [vmem:[#allocation4 + $0x20] sm:$0xff]
    %v867 = vld [vmem:[#allocation4 + $0x28] sm:$0xff]
    %v868 = vld [vmem:[#allocation4 + $0x30] sm:$0xff]
    %v869 = vld [vmem:[#allocation4 + $0x38] sm:$0xff]
    %v870 = vld [vmem:[#allocation4 + $0x40] sm:$0xff]
    %v871 = vld [vmem:[#allocation4 + $0x48] sm:$0xff]
    %v872 = vld [vmem:[#allocation4 + $0x50] sm:$0xff]
    %v873 = vld [vmem:[#allocation4 + $0x58] sm:$0xff]
    %v874 = vld [vmem:[#allocation4 + $0x60] sm:$0xff]
    %v875 = vld [vmem:[#allocation4 + $0x68] sm:$0xff]
    %v876 = vld [vmem:[#allocation4 + $0x70] sm:$0xff]
    %v877 = vld [vmem:[#allocation4 + $0x78] sm:$0xff]
    %v878 = vmul.f32 %v493, %v256
    %v879 = vmul.f32 %v494, %v259
    %v880 = vmul.f32 %v495, %v264
    %v881 = vmul.f32 %v496, %v267
    %v882 = vmul.f32 %v497, %v272
    %v883 = vmul.f32 %v498, %v275
    %v884 = vmul.f32 %v499, %v280
    %v885 = vmul.f32 %v500, %v283
    %v886 = vmul.f32 %v501, %v288
    %v887 = vmul.f32 %v502, %v291
    %v888 = vmul.f32 %v503, %v296
    %v889 = vmul.f32 %v504, %v299
    %v890 = vmul.f32 %v505, %v304
    %v891 = vmul.f32 %v506, %v307
    %v892 = vmul.f32 %v507, %v312
    %v893 = vmul.f32 %v508, %v315
    %894 = vadd.xlane.f32.xlu0 %v878
    %v895 = vpop.xlane.xlu0 %894
    %896 = vadd.xlane.f32.xlu0 %v879
    %v897 = vpop.xlane.xlu0 %896
    %898 = vadd.xlane.f32.xlu0 %v880
    %v899 = vpop.xlane.xlu0 %898
    %900 = vadd.xlane.f32.xlu0 %v881
    %v901 = vpop.xlane.xlu0 %900
    %902 = vadd.xlane.f32.xlu0 %v882
    %v903 = vpop.xlane.xlu0 %902
    %904 = vadd.xlane.f32.xlu0 %v883
    %v905 = vpop.xlane.xlu0 %904
    %906 = vadd.xlane.f32.xlu0 %v884
    %v907 = vpop.xlane.xlu0 %906
    %908 = vadd.xlane.f32.xlu0 %v885
    %v909 = vpop.xlane.xlu0 %908
    %910 = vadd.xlane.f32.xlu0 %v886
    %v911 = vpop.xlane.xlu0 %910
    %912 = vadd.xlane.f32.xlu0 %v887
    %v913 = vpop.xlane.xlu0 %912
    %914 = vadd.xlane.f32.xlu0 %v888
    %v915 = vpop.xlane.xlu0 %914
    %916 = vadd.xlane.f32.xlu0 %v889
    %v917 = vpop.xlane.xlu0 %916
    %918 = vadd.xlane.f32.xlu0 %v890
    %v919 = vpop.xlane.xlu0 %918
    %920 = vadd.xlane.f32.xlu0 %v891
    %v921 = vpop.xlane.xlu0 %920
    %922 = vadd.xlane.f32.xlu0 %v892
    %v923 = vpop.xlane.xlu0 %922
    %924 = vadd.xlane.f32.xlu0 %v893
    %v925 = vpop.xlane.xlu0 %924
    %v926 = vadd.f32 %v862, %v895
    %v927 = vadd.f32 %v863, %v897
    %v928 = vadd.f32 %v864, %v899
    %v929 = vadd.f32 %v865, %v901
    %v930 = vadd.f32 %v866, %v903
    %v931 = vadd.f32 %v867, %v905
    %v932 = vadd.f32 %v868, %v907
    %v933 = vadd.f32 %v869, %v909
    %v934 = vadd.f32 %v870, %v911
    %v935 = vadd.f32 %v871, %v913
    %v936 = vadd.f32 %v872, %v915
    %v937 = vadd.f32 %v873, %v917
    %v938 = vadd.f32 %v874, %v919
    %v939 = vadd.f32 %v875, %v921
    %v940 = vadd.f32 %v876, %v923
    %v941 = vadd.f32 %v877, %v925
    %942 = vst.msk [vmem:[#allocation4] sm:$0xff] %vm845, %v926
    %943 = vst.msk [vmem:[#allocation4 + $0x8] sm:$0xff] %vm845, %v927
    %944 = vst.msk [vmem:[#allocation4 + $0x10] sm:$0xff] %vm845, %v928
    %945 = vst.msk [vmem:[#allocation4 + $0x18] sm:$0xff] %vm845, %v929
    %946 = vst.msk [vmem:[#allocation4 + $0x20] sm:$0xff] %vm845, %v930
    %947 = vst.msk [vmem:[#allocation4 + $0x28] sm:$0xff] %vm845, %v931
    %948 = vst.msk [vmem:[#allocation4 + $0x30] sm:$0xff] %vm845, %v932
    %949 = vst.msk [vmem:[#allocation4 + $0x38] sm:$0xff] %vm845, %v933
    %950 = vst.msk [vmem:[#allocation4 + $0x40] sm:$0xff] %vm845, %v934
    %951 = vst.msk [vmem:[#allocation4 + $0x48] sm:$0xff] %vm845, %v935
    %952 = vst.msk [vmem:[#allocation4 + $0x50] sm:$0xff] %vm845, %v936
    %953 = vst.msk [vmem:[#allocation4 + $0x58] sm:$0xff] %vm845, %v937
    %954 = vst.msk [vmem:[#allocation4 + $0x60] sm:$0xff] %vm845, %v938
    %955 = vst.msk [vmem:[#allocation4 + $0x68] sm:$0xff] %vm845, %v939
    %956 = vst.msk [vmem:[#allocation4 + $0x70] sm:$0xff] %vm845, %v940
    %957 = vst.msk [vmem:[#allocation4 + $0x78] sm:$0xff] %vm845, %v941
    %v958 = vld [vmem:[#allocation5] sm:$0xff]
    %v959 = vld [vmem:[#allocation5 + $0x8] sm:$0xff]
    %v960 = vld [vmem:[#allocation5 + $0x10] sm:$0xff]
    %v961 = vld [vmem:[#allocation5 + $0x18] sm:$0xff]
    %v962 = vld [vmem:[#allocation5 + $0x20] sm:$0xff]
    %v963 = vld [vmem:[#allocation5 + $0x28] sm:$0xff]
    %v964 = vld [vmem:[#allocation5 + $0x30] sm:$0xff]
    %v965 = vld [vmem:[#allocation5 + $0x38] sm:$0xff]
    %v966 = vld [vmem:[#allocation5 + $0x40] sm:$0xff]
    %v967 = vld [vmem:[#allocation5 + $0x48] sm:$0xff]
    %v968 = vld [vmem:[#allocation5 + $0x50] sm:$0xff]
    %v969 = vld [vmem:[#allocation5 + $0x58] sm:$0xff]
    %v970 = vld [vmem:[#allocation5 + $0x60] sm:$0xff]
    %v971 = vld [vmem:[#allocation5 + $0x68] sm:$0xff]
    %v972 = vld [vmem:[#allocation5 + $0x70] sm:$0xff]
    %v973 = vld [vmem:[#allocation5 + $0x78] sm:$0xff]
    %974 = vadd.xlane.f32.xlu0 %v493
    %v975 = vpop.xlane.xlu0 %974
    %976 = vadd.xlane.f32.xlu0 %v494
    %v977 = vpop.xlane.xlu0 %976
    %978 = vadd.xlane.f32.xlu0 %v495
    %v979 = vpop.xlane.xlu0 %978
    %980 = vadd.xlane.f32.xlu0 %v496
    %v981 = vpop.xlane.xlu0 %980
    %982 = vadd.xlane.f32.xlu0 %v497
    %v983 = vpop.xlane.xlu0 %982
    %984 = vadd.xlane.f32.xlu0 %v498
    %v985 = vpop.xlane.xlu0 %984
    %986 = vadd.xlane.f32.xlu0 %v499
    %v987 = vpop.xlane.xlu0 %986
    %988 = vadd.xlane.f32.xlu0 %v500
    %v989 = vpop.xlane.xlu0 %988
    %990 = vadd.xlane.f32.xlu0 %v501
    %v991 = vpop.xlane.xlu0 %990
    %992 = vadd.xlane.f32.xlu0 %v502
    %v993 = vpop.xlane.xlu0 %992
    %994 = vadd.xlane.f32.xlu0 %v503
    %v995 = vpop.xlane.xlu0 %994
    %996 = vadd.xlane.f32.xlu0 %v504
    %v997 = vpop.xlane.xlu0 %996
    %998 = vadd.xlane.f32.xlu0 %v505
    %v999 = vpop.xlane.xlu0 %998
    %1000 = vadd.xlane.f32.xlu0 %v506
    %v1001 = vpop.xlane.xlu0 %1000
    %1002 = vadd.xlane.f32.xlu0 %v507
    %v1003 = vpop.xlane.xlu0 %1002
    %1004 = vadd.xlane.f32.xlu0 %v508
    %v1005 = vpop.xlane.xlu0 %1004
    %v1006 = vadd.f32 %v958, %v975
    %v1007 = vadd.f32 %v959, %v977
    %v1008 = vadd.f32 %v960, %v979
    %v1009 = vadd.f32 %v961, %v981
    %v1010 = vadd.f32 %v962, %v983
    %v1011 = vadd.f32 %v963, %v985
    %v1012 = vadd.f32 %v964, %v987
    %v1013 = vadd.f32 %v965, %v989
    %v1014 = vadd.f32 %v966, %v991
    %v1015 = vadd.f32 %v967, %v993
    %v1016 = vadd.f32 %v968, %v995
    %v1017 = vadd.f32 %v969, %v997
    %v1018 = vadd.f32 %v970, %v999
    %v1019 = vadd.f32 %v971, %v1001
    %v1020 = vadd.f32 %v972, %v1003
    %v1021 = vadd.f32 %v973, %v1005
    %1022 = vst.msk [vmem:[#allocation5] sm:$0xff] %vm845, %v1006
    %1023 = vst.msk [vmem:[#allocation5 + $0x8] sm:$0xff] %vm845, %v1007
    %1024 = vst.msk [vmem:[#allocation5 + $0x10] sm:$0xff] %vm845, %v1008
    %1025 = vst.msk [vmem:[#allocation5 + $0x18] sm:$0xff] %vm845, %v1009
    %1026 = vst.msk [vmem:[#allocation5 + $0x20] sm:$0xff] %vm845, %v1010
    %1027 = vst.msk [vmem:[#allocation5 + $0x28] sm:$0xff] %vm845, %v1011
    %1028 = vst.msk [vmem:[#allocation5 + $0x30] sm:$0xff] %vm845, %v1012
    %1029 = vst.msk [vmem:[#allocation5 + $0x38] sm:$0xff] %vm845, %v1013
    %1030 = vst.msk [vmem:[#allocation5 + $0x40] sm:$0xff] %vm845, %v1014
    %1031 = vst.msk [vmem:[#allocation5 + $0x48] sm:$0xff] %vm845, %v1015
    %1032 = vst.msk [vmem:[#allocation5 + $0x50] sm:$0xff] %vm845, %v1016
    %1033 = vst.msk [vmem:[#allocation5 + $0x58] sm:$0xff] %vm845, %v1017
    %1034 = vst.msk [vmem:[#allocation5 + $0x60] sm:$0xff] %vm845, %v1018
    %1035 = vst.msk [vmem:[#allocation5 + $0x68] sm:$0xff] %vm845, %v1019
    %1036 = vst.msk [vmem:[#allocation5 + $0x70] sm:$0xff] %vm845, %v1020
    %1037 = vst.msk [vmem:[#allocation5 + $0x78] sm:$0xff] %vm845, %v1021
    %1038 = vst.msk [vmem:[#allocation2] sm:$0xff] %vm845, %v557
    %1039 = vst.msk [vmem:[#allocation2 + $0x8] sm:$0xff] %vm845, %v558
    %1040 = vst.msk [vmem:[#allocation2 + $0x10] sm:$0xff] %vm845, %v559
    %1041 = vst.msk [vmem:[#allocation2 + $0x18] sm:$0xff] %vm845, %v560
    %1042 = vst.msk [vmem:[#allocation2 + $0x20] sm:$0xff] %vm845, %v561
    %1043 = vst.msk [vmem:[#allocation2 + $0x28] sm:$0xff] %vm845, %v562
    %1044 = vst.msk [vmem:[#allocation2 + $0x30] sm:$0xff] %vm845, %v563
    %1045 = vst.msk [vmem:[#allocation2 + $0x38] sm:$0xff] %vm845, %v564
    %1046 = vst.msk [vmem:[#allocation2 + $0x40] sm:$0xff] %vm845, %v565
    %1047 = vst.msk [vmem:[#allocation2 + $0x48] sm:$0xff] %vm845, %v566
    %1048 = vst.msk [vmem:[#allocation2 + $0x50] sm:$0xff] %vm845, %v567
    %1049 = vst.msk [vmem:[#allocation2 + $0x58] sm:$0xff] %vm845, %v568
    %1050 = vst.msk [vmem:[#allocation2 + $0x60] sm:$0xff] %vm845, %v569
    %1051 = vst.msk [vmem:[#allocation2 + $0x68] sm:$0xff] %vm845, %v570
    %1052 = vst.msk [vmem:[#allocation2 + $0x70] sm:$0xff] %vm845, %v571
    %1053 = vst.msk [vmem:[#allocation2 + $0x78] sm:$0xff] %vm845, %v572
    // Predicated region
    $region22: #{tpu_custom_call.1} parent=1 // pred_check
      %p1054 = pneg %p19
    $region23: #{tpu_custom_call.1} parent=1 // pred_check_branch
      %1056 = sbr.rel (%p1054) target = $region25
    $region24: #{tpu_custom_call.1} parent=1 // pred_region
      %v1057 = vld [vmem:[#allocation2] sm:$0xff]
      %v1058 = vld [vmem:[#allocation2 + $0x8] sm:$0xff]
      %v1059 = vld [vmem:[#allocation2 + $0x10] sm:$0xff]
      %v1060 = vld [vmem:[#allocation2 + $0x18] sm:$0xff]
      %v1061 = vld [vmem:[#allocation2 + $0x20] sm:$0xff]
      %v1062 = vld [vmem:[#allocation2 + $0x28] sm:$0xff]
      %v1063 = vld [vmem:[#allocation2 + $0x30] sm:$0xff]
      %v1064 = vld [vmem:[#allocation2 + $0x38] sm:$0xff]
      %v1065 = vld [vmem:[#allocation2 + $0x40] sm:$0xff]
      %v1066 = vld [vmem:[#allocation2 + $0x48] sm:$0xff]
      %v1067 = vld [vmem:[#allocation2 + $0x50] sm:$0xff]
      %v1068 = vld [vmem:[#allocation2 + $0x58] sm:$0xff]
      %v1069 = vld [vmem:[#allocation2 + $0x60] sm:$0xff]
      %v1070 = vld [vmem:[#allocation2 + $0x68] sm:$0xff]
      %v1071 = vld [vmem:[#allocation2 + $0x70] sm:$0xff]
      %v1072 = vld [vmem:[#allocation2 + $0x78] sm:$0xff]
      %v1073 = vld [vmem:[#allocation3] sm:$0xff]
      %v1074 = vld [vmem:[#allocation3 + $0x8] sm:$0xff]
      %v1075 = vld [vmem:[#allocation3 + $0x10] sm:$0xff]
      %v1076 = vld [vmem:[#allocation3 + $0x18] sm:$0xff]
      %v1077 = vld [vmem:[#allocation3 + $0x20] sm:$0xff]
      %v1078 = vld [vmem:[#allocation3 + $0x28] sm:$0xff]
      %v1079 = vld [vmem:[#allocation3 + $0x30] sm:$0xff]
      %v1080 = vld [vmem:[#allocation3 + $0x38] sm:$0xff]
      %v1081 = vld [vmem:[#allocation3 + $0x40] sm:$0xff]
      %v1082 = vld [vmem:[#allocation3 + $0x48] sm:$0xff]
      %v1083 = vld [vmem:[#allocation3 + $0x50] sm:$0xff]
      %v1084 = vld [vmem:[#allocation3 + $0x58] sm:$0xff]
      %v1085 = vld [vmem:[#allocation3 + $0x60] sm:$0xff]
      %v1086 = vld [vmem:[#allocation3 + $0x68] sm:$0xff]
      %v1087 = vld [vmem:[#allocation3 + $0x70] sm:$0xff]
      %v1088 = vld [vmem:[#allocation3 + $0x78] sm:$0xff]
      %v1089 = vld [vmem:[#allocation4] sm:$0xff]
      %v1090 = vld [vmem:[#allocation4 + $0x8] sm:$0xff]
      %v1091 = vld [vmem:[#allocation4 + $0x10] sm:$0xff]
      %v1092 = vld [vmem:[#allocation4 + $0x18] sm:$0xff]
      %v1093 = vld [vmem:[#allocation4 + $0x20] sm:$0xff]
      %v1094 = vld [vmem:[#allocation4 + $0x28] sm:$0xff]
      %v1095 = vld [vmem:[#allocation4 + $0x30] sm:$0xff]
      %v1096 = vld [vmem:[#allocation4 + $0x38] sm:$0xff]
      %v1097 = vld [vmem:[#allocation4 + $0x40] sm:$0xff]
      %v1098 = vld [vmem:[#allocation4 + $0x48] sm:$0xff]
      %v1099 = vld [vmem:[#allocation4 + $0x50] sm:$0xff]
      %v1100 = vld [vmem:[#allocation4 + $0x58] sm:$0xff]
      %v1101 = vld [vmem:[#allocation4 + $0x60] sm:$0xff]
      %v1102 = vld [vmem:[#allocation4 + $0x68] sm:$0xff]
      %v1103 = vld [vmem:[#allocation4 + $0x70] sm:$0xff]
      %v1104 = vld [vmem:[#allocation4 + $0x78] sm:$0xff]
      %v1105 = vld [vmem:[#allocation5] sm:$0xff]
      %v1106 = vld [vmem:[#allocation5 + $0x8] sm:$0xff]
      %v1107 = vld [vmem:[#allocation5 + $0x10] sm:$0xff]
      %v1108 = vld [vmem:[#allocation5 + $0x18] sm:$0xff]
      %v1109 = vld [vmem:[#allocation5 + $0x20] sm:$0xff]
      %v1110 = vld [vmem:[#allocation5 + $0x28] sm:$0xff]
      %v1111 = vld [vmem:[#allocation5 + $0x30] sm:$0xff]
      %v1112 = vld [vmem:[#allocation5 + $0x38] sm:$0xff]
      %v1113 = vld [vmem:[#allocation5 + $0x40] sm:$0xff]
      %v1114 = vld [vmem:[#allocation5 + $0x48] sm:$0xff]
      %v1115 = vld [vmem:[#allocation5 + $0x50] sm:$0xff]
      %v1116 = vld [vmem:[#allocation5 + $0x58] sm:$0xff]
      %v1117 = vld [vmem:[#allocation5 + $0x60] sm:$0xff]
      %v1118 = vld [vmem:[#allocation5 + $0x68] sm:$0xff]
      %v1119 = vld [vmem:[#allocation5 + $0x70] sm:$0xff]
      %v1120 = vld [vmem:[#allocation5 + $0x78] sm:$0xff]
      %vm1121 = vcmp.gt.f32.partialorder %v1105, 0.0
      %vm1122 = vcmp.gt.f32.partialorder %v1106, 0.0
      %vm1123 = vcmp.gt.f32.partialorder %v1107, 0.0
      %vm1124 = vcmp.gt.f32.partialorder %v1108, 0.0
      %vm1125 = vcmp.gt.f32.partialorder %v1109, 0.0
      %vm1126 = vcmp.gt.f32.partialorder %v1110, 0.0
      %vm1127 = vcmp.gt.f32.partialorder %v1111, 0.0
      %vm1128 = vcmp.gt.f32.partialorder %v1112, 0.0
      %vm1129 = vcmp.gt.f32.partialorder %v1113, 0.0
      %vm1130 = vcmp.gt.f32.partialorder %v1114, 0.0
      %vm1131 = vcmp.gt.f32.partialorder %v1115, 0.0
      %vm1132 = vcmp.gt.f32.partialorder %v1116, 0.0
      %vm1133 = vcmp.gt.f32.partialorder %v1117, 0.0
      %vm1134 = vcmp.gt.f32.partialorder %v1118, 0.0
      %vm1135 = vcmp.gt.f32.partialorder %v1119, 0.0
      %vm1136 = vcmp.gt.f32.partialorder %v1120, 0.0
      %v1137 = vlog2.pop %v1073
      %v1138 = vmul.f32 %v1137, 0.6931472
      %v1139 = vlog2.pop %v1074
      %v1140 = vmul.f32 %v1139, 0.6931472
      %v1141 = vlog2.pop %v1075
      %v1142 = vmul.f32 %v1141, 0.6931472
      %v1143 = vlog2.pop %v1076
      %v1144 = vmul.f32 %v1143, 0.6931472
      %v1145 = vlog2.pop %v1077
      %v1146 = vmul.f32 %v1145, 0.6931472
      %v1147 = vlog2.pop %v1078
      %v1148 = vmul.f32 %v1147, 0.6931472
      %v1149 = vlog2.pop %v1079
      %v1150 = vmul.f32 %v1149, 0.6931472
      %v1151 = vlog2.pop %v1080
      %v1152 = vmul.f32 %v1151, 0.6931472
      %v1153 = vlog2.pop %v1081
      %v1154 = vmul.f32 %v1153, 0.6931472
      %v1155 = vlog2.pop %v1082
      %v1156 = vmul.f32 %v1155, 0.6931472
      %v1157 = vlog2.pop %v1083
      %v1158 = vmul.f32 %v1157, 0.6931472
      %v1159 = vlog2.pop %v1084
      %v1160 = vmul.f32 %v1159, 0.6931472
      %v1161 = vlog2.pop %v1085
      %v1162 = vmul.f32 %v1161, 0.6931472
      %v1163 = vlog2.pop %v1086
      %v1164 = vmul.f32 %v1163, 0.6931472
      %v1165 = vlog2.pop %v1087
      %v1166 = vmul.f32 %v1165, 0.6931472
      %v1167 = vlog2.pop %v1088
      %v1168 = vmul.f32 %v1167, 0.6931472
      %v1169 = vadd.f32 %v1057, %v1138
      %v1170 = vadd.f32 %v1058, %v1140
      %v1171 = vadd.f32 %v1059, %v1142
      %v1172 = vadd.f32 %v1060, %v1144
      %v1173 = vadd.f32 %v1061, %v1146
      %v1174 = vadd.f32 %v1062, %v1148
      %v1175 = vadd.f32 %v1063, %v1150
      %v1176 = vadd.f32 %v1064, %v1152
      %v1177 = vadd.f32 %v1065, %v1154
      %v1178 = vadd.f32 %v1066, %v1156
      %v1179 = vadd.f32 %v1067, %v1158
      %v1180 = vadd.f32 %v1068, %v1160
      %v1181 = vadd.f32 %v1069, %v1162
      %v1182 = vadd.f32 %v1070, %v1164
      %v1183 = vadd.f32 %v1071, %v1166
      %v1184 = vadd.f32 %v1072, %v1168
      %v1185 = vmul.f32 %v1105, %v1169
      %v1186 = vmul.f32 %v1106, %v1170
      %v1187 = vmul.f32 %v1107, %v1171
      %v1188 = vmul.f32 %v1108, %v1172
      %v1189 = vmul.f32 %v1109, %v1173
      %v1190 = vmul.f32 %v1110, %v1174
      %v1191 = vmul.f32 %v1111, %v1175
      %v1192 = vmul.f32 %v1112, %v1176
      %v1193 = vmul.f32 %v1113, %v1177
      %v1194 = vmul.f32 %v1114, %v1178
      %v1195 = vmul.f32 %v1115, %v1179
      %v1196 = vmul.f32 %v1116, %v1180
      %v1197 = vmul.f32 %v1117, %v1181
      %v1198 = vmul.f32 %v1118, %v1182
      %v1199 = vmul.f32 %v1119, %v1183
      %v1200 = vmul.f32 %v1120, %v1184
      %v1201 = vsub.f32 %v1089, %v1185
      %v1202 = vsub.f32 %v1090, %v1186
      %v1203 = vsub.f32 %v1091, %v1187
      %v1204 = vsub.f32 %v1092, %v1188
      %v1205 = vsub.f32 %v1093, %v1189
      %v1206 = vsub.f32 %v1094, %v1190
      %v1207 = vsub.f32 %v1095, %v1191
      %v1208 = vsub.f32 %v1096, %v1192
      %v1209 = vsub.f32 %v1097, %v1193
      %v1210 = vsub.f32 %v1098, %v1194
      %v1211 = vsub.f32 %v1099, %v1195
      %v1212 = vsub.f32 %v1100, %v1196
      %v1213 = vsub.f32 %v1101, %v1197
      %v1214 = vsub.f32 %v1102, %v1198
      %v1215 = vsub.f32 %v1103, %v1199
      %v1216 = vsub.f32 %v1104, %v1200
      %v1217 = vsel %vm1121, %v1105, 1.0
      %v1218 = vsel %vm1122, %v1106, 1.0
      %v1219 = vsel %vm1123, %v1107, 1.0
      %v1220 = vsel %vm1124, %v1108, 1.0
      %v1221 = vsel %vm1125, %v1109, 1.0
      %v1222 = vsel %vm1126, %v1110, 1.0
      %v1223 = vsel %vm1127, %v1111, 1.0
      %v1224 = vsel %vm1128, %v1112, 1.0
      %v1225 = vsel %vm1129, %v1113, 1.0
      %v1226 = vsel %vm1130, %v1114, 1.0
      %v1227 = vsel %vm1131, %v1115, 1.0
      %v1228 = vsel %vm1132, %v1116, 1.0
      %v1229 = vsel %vm1133, %v1117, 1.0
      %v1230 = vsel %vm1134, %v1118, 1.0
      %v1231 = vsel %vm1135, %v1119, 1.0
      %v1232 = vsel %vm1136, %v1120, 1.0
      %v1233 = vrcp.pop %v1217
      %v1234 = vmul.f32 %v1201, %v1233
      %v1235 = vrcp.pop %v1218
      %v1236 = vmul.f32 %v1202, %v1235
      %v1237 = vrcp.pop %v1219
      %v1238 = vmul.f32 %v1203, %v1237
      %v1239 = vrcp.pop %v1220
      %v1240 = vmul.f32 %v1204, %v1239
      %v1241 = vrcp.pop %v1221
      %v1242 = vmul.f32 %v1205, %v1241
      %v1243 = vrcp.pop %v1222
      %v1244 = vmul.f32 %v1206, %v1243
      %v1245 = vrcp.pop %v1223
      %v1246 = vmul.f32 %v1207, %v1245
      %v1247 = vrcp.pop %v1224
      %v1248 = vmul.f32 %v1208, %v1247
      %v1249 = vrcp.pop %v1225
      %v1250 = vmul.f32 %v1209, %v1249
      %v1251 = vrcp.pop %v1226
      %v1252 = vmul.f32 %v1210, %v1251
      %v1253 = vrcp.pop %v1227
      %v1254 = vmul.f32 %v1211, %v1253
      %v1255 = vrcp.pop %v1228
      %v1256 = vmul.f32 %v1212, %v1255
      %v1257 = vrcp.pop %v1229
      %v1258 = vmul.f32 %v1213, %v1257
      %v1259 = vrcp.pop %v1230
      %v1260 = vmul.f32 %v1214, %v1259
      %v1261 = vrcp.pop %v1231
      %v1262 = vmul.f32 %v1215, %v1261
      %v1263 = vrcp.pop %v1232
      %v1264 = vmul.f32 %v1216, %v1263
      %v1265 = vsel %vm1121, %v1234, 0.0
      %v1266 = vsel %vm1122, %v1236, 0.0
      %v1267 = vsel %vm1123, %v1238, 0.0
      %v1268 = vsel %vm1124, %v1240, 0.0
      %v1269 = vsel %vm1125, %v1242, 0.0
      %v1270 = vsel %vm1126, %v1244, 0.0
      %v1271 = vsel %vm1127, %v1246, 0.0
      %v1272 = vsel %vm1128, %v1248, 0.0
      %v1273 = vsel %vm1129, %v1250, 0.0
      %v1274 = vsel %vm1130, %v1252, 0.0
      %v1275 = vsel %vm1131, %v1254, 0.0
      %v1276 = vsel %vm1132, %v1256, 0.0
      %v1277 = vsel %vm1133, %v1258, 0.0
      %v1278 = vsel %vm1134, %v1260, 0.0
      %v1279 = vsel %vm1135, %v1262, 0.0
      %v1280 = vsel %vm1136, %v1264, 0.0
      %v1281 = vmul.f32 %v1265, -1.0
      %v1282 = vmul.f32 %v1266, -1.0
      %v1283 = vmul.f32 %v1267, -1.0
      %v1284 = vmul.f32 %v1268, -1.0
      %v1285 = vmul.f32 %v1269, -1.0
      %v1286 = vmul.f32 %v1270, -1.0
      %v1287 = vmul.f32 %v1271, -1.0
      %v1288 = vmul.f32 %v1272, -1.0
      %v1289 = vmul.f32 %v1273, -1.0
      %v1290 = vmul.f32 %v1274, -1.0
      %v1291 = vmul.f32 %v1275, -1.0
      %v1292 = vmul.f32 %v1276, -1.0
      %v1293 = vmul.f32 %v1277, -1.0
      %v1294 = vmul.f32 %v1278, -1.0
      %v1295 = vmul.f32 %v1279, -1.0
      %v1296 = vmul.f32 %v1280, -1.0
      %vm1297 = vcmp.lt.s32.totalorder %v337, 16
      %vm1298 = vcmp.lt.s32.totalorder %v338, 16
      %vm1299 = vcmp.lt.s32.totalorder %v339, 16
      %vm1300 = vcmp.lt.s32.totalorder %v340, 16
      %vm1301 = vcmp.lt.s32.totalorder %v341, 16
      %vm1302 = vcmp.lt.s32.totalorder %v342, 16
      %vm1303 = vcmp.lt.s32.totalorder %v343, 16
      %vm1304 = vcmp.lt.s32.totalorder %v344, 16
      %vm1305 = vcmp.lt.s32.totalorder %v345, 16
      %vm1306 = vcmp.lt.s32.totalorder %v346, 16
      %vm1307 = vcmp.lt.s32.totalorder %v347, 16
      %vm1308 = vcmp.lt.s32.totalorder %v348, 16
      %vm1309 = vcmp.lt.s32.totalorder %v349, 16
      %vm1310 = vcmp.lt.s32.totalorder %v350, 16
      %vm1311 = vcmp.lt.s32.totalorder %v351, 16
      %vm1312 = vcmp.lt.s32.totalorder %v352, 16
      %v1313 = vsel %vm1297, %v1281, 0.0
      %v1314 = vsel %vm1298, %v1282, 0.0
      %v1315 = vsel %vm1299, %v1283, 0.0
      %v1316 = vsel %vm1300, %v1284, 0.0
      %v1317 = vsel %vm1301, %v1285, 0.0
      %v1318 = vsel %vm1302, %v1286, 0.0
      %v1319 = vsel %vm1303, %v1287, 0.0
      %v1320 = vsel %vm1304, %v1288, 0.0
      %v1321 = vsel %vm1305, %v1289, 0.0
      %v1322 = vsel %vm1306, %v1290, 0.0
      %v1323 = vsel %vm1307, %v1291, 0.0
      %v1324 = vsel %vm1308, %v1292, 0.0
      %v1325 = vsel %vm1309, %v1293, 0.0
      %v1326 = vsel %vm1310, %v1294, 0.0
      %v1327 = vsel %vm1311, %v1295, 0.0
      %v1328 = vsel %vm1312, %v1296, 0.0
      %v1329 = vsel %vm845, %v1313, 0.0
      %v1330 = vsel %vm845, %v1314, 0.0
      %v1331 = vadd.f32 %v1329, %v1330
      %v1332 = vsel %vm845, %v1315, 0.0
      %v1333 = vadd.f32 %v1331, %v1332
      %v1334 = vsel %vm845, %v1316, 0.0
      %v1335 = vadd.f32 %v1333, %v1334
      %v1336 = vsel %vm845, %v1317, 0.0
      %v1337 = vadd.f32 %v1335, %v1336
      %v1338 = vsel %vm845, %v1318, 0.0
      %v1339 = vadd.f32 %v1337, %v1338
      %v1340 = vsel %vm845, %v1319, 0.0
      %v1341 = vadd.f32 %v1339, %v1340
      %v1342 = vsel %vm845, %v1320, 0.0
      %v1343 = vadd.f32 %v1341, %v1342
      %v1344 = vsel %vm845, %v1321, 0.0
      %v1345 = vadd.f32 %v1343, %v1344
      %v1346 = vsel %vm845, %v1322, 0.0
      %v1347 = vadd.f32 %v1345, %v1346
      %v1348 = vsel %vm845, %v1323, 0.0
      %v1349 = vadd.f32 %v1347, %v1348
      %v1350 = vsel %vm845, %v1324, 0.0
      %v1351 = vadd.f32 %v1349, %v1350
      %v1352 = vsel %vm845, %v1325, 0.0
      %v1353 = vadd.f32 %v1351, %v1352
      %v1354 = vsel %vm845, %v1326, 0.0
      %v1355 = vadd.f32 %v1353, %v1354
      %v1356 = vsel %vm845, %v1327, 0.0
      %v1357 = vadd.f32 %v1355, %v1356
      %v1358 = vsel %vm845, %v1328, 0.0
      %v1359 = vadd.f32 %v1357, %v1358
      %1360 = vadd.xlane.f32.xlu0 %v1359
      %v1361 = vpop.xlane.xlu0 %1360
      %v1362 = vrot.slane %v1361, 4
      %v1363 = vadd.f32 %v1361, %v1362
      %v1364 = vrot.slane %v1363, 2
      %v1365 = vadd.f32 %v1363, %v1364
      %v1366 = vrot.slane %v1365, 1
      %v1367 = vadd.f32 %v1365, %v1366
      %s1368 = vtos %v1367
      %v1369 = vstv %s1368
      %1370 = vst [vmem:[#allocation6] sm:$0xff] %v1369
    $region25: #{tpu_custom_call.1} parent=1 // pred_fallthru
      _
    // Predicated region
    $region26: #{tpu_custom_call.1} parent=1 // pred_check
      _
    $region27: #{tpu_custom_call.1} parent=1 // pred_check_branch
      %1372 = sbr.rel (0) target = $region29
    $region28: #{tpu_custom_call.1} parent=1 // pred_region
      %s1374 = ssub.s32 128, 128
      %1375 = vsyncadd [#allocation7], %s1374
      %s1377 = sshll.u32 [#allocation6], 4
      %s1378 = int_to_ptr.vmem [resolvable:$true] %s1377
      %1380 = dma.vmem_to_hbm [thread:$0]  %s1378, 128, %s4, [#allocation7]
    $region29: #{tpu_custom_call.1} parent=1 // pred_fallthru
      _
    // Predicated region
    $region30: #{tpu_custom_call.1} parent=1 // pred_check
      _
    $region31: #{tpu_custom_call.1} parent=1 // pred_check_branch
      %1382 = sbr.rel (0) target = $region33
    $region32: #{tpu_custom_call.1} parent=1 // pred_region
      %1383 = dma.done [#allocation7], 128
    $region33: #{tpu_custom_call.1} parent=1 // pred_fallthru
      _
    %1384 = vsyncpa [#allocation7], 1

</llo_original>
